<compile_context>
chip_gen: v5e
topology: v5e:2x2
jax: 0.10.0
libtpu: 0.0.40
codegen_flags: <defaults>
</compile_context>

<pallas_src>
import functools

import jax
import jax.numpy as jnp
from jax.experimental import pallas as pl
from jax.experimental.pallas import tpu as pltpu


def _cdiv(a, b):
    return -(-a // b)


def _pick_batch_block(padded_batch):
    """Largest lane-dense (multiple-of-128) tile that still yields >=2 batch tiles.

    padded_batch is already a multiple of 128.  Preferring >=2 tiles lets the "parallel"
    batch grid axis be sharded across both TensorCores on v7x; v5e/v6e (1 TC) are
    indifferent to the split.
    """
    for cand in (512, 256, 128):
        if padded_batch % cand == 0 and padded_batch // cand >= 2:
            return cand
    return padded_batch  # padded_batch == 128: single lane tile, nothing to split.


def crf_forward_kernel(featsT_ref, mask_ref, expT_ref, cmax_ref, eos_ref,
                       out_ref, alpha_ref, *, sos_idx, t_block):
    """One grid step = t_block timesteps of the CRF forward recurrence for one batch tile.

    featsT_ref : (t_block, C, Bt) emission scores (class on sublanes, batch on lanes)
    mask_ref   : (t_block, 1, Bt) float mask
    expT_ref   : (C, C)  exp(transition[next, prev] - cmax[next])
    cmax_ref   : (C, 1)  cmax[next] = max_prev transition[next, prev]
    eos_ref    : (C, 1)  transition[<EOS>, tag]
    out_ref    : (1, Bt) log partition per batch element (written at the last seq block)
    alpha_ref  : (C, Bt) VMEM scratch alphaT[tag, b]; persists across the seq-block axis
    """
    tb = pl.program_id(1)
    n_class, bt = alpha_ref.shape

    @pl.when(tb == 0)
    def _init():
        tag = jax.lax.broadcasted_iota(jnp.int32, (n_class, bt), 0)
        alpha_ref[...] = jnp.where(tag == sos_idx, 0.0, -10000.0).astype(jnp.float32)

    # Loop-invariant small operands, hoisted out of the time loop.
    expT = expT_ref[...]          # (C_next, C_prev)
    cmax = cmax_ref[...]          # (C_next, 1)

    alpha = alpha_ref[...]        # (C, bt)

    # Fully unrolled time loop (t_block <= 32).  Only `alpha` (a few vregs) is carried
    # across iterations, so the static unroll keeps live ranges small while giving the
    # scheduler full visibility; ref indices are static slices.
    for i in range(t_block):
        featT = featsT_ref[i]                                      # (C, bt)
        mask_t = mask_ref[i]                                       # (1, bt)

        m = jnp.max(alpha, axis=0, keepdims=True)                  # (1, bt)  max over prev
        p = jnp.exp(alpha - m)                                     # (C, bt)  C*bt exps
        # s[next, b] = sum_prev exp(T[next,prev]-cmax[next]) * exp(alpha[prev,b]-m[b])
        s = jnp.dot(expT, p,
                    preferred_element_type=jnp.float32,
                    precision=jax.lax.Precision.HIGHEST)           # (C, bt)  MXU
        new_alpha = featT + m + cmax + jnp.log(s)                  # (C, bt)
        alpha = jnp.where(mask_t > 0, new_alpha, alpha)            # masked update

    alpha_ref[...] = alpha

    @pl.when(tb == pl.num_programs(1) - 1)
    def _finalize():
        final = alpha + eos_ref[...]                               # (C, bt)
        m2 = jnp.max(final, axis=0, keepdims=True)                 # (1, bt)
        out_ref[...] = m2 + jnp.log(
            jnp.sum(jnp.exp(final - m2), axis=0, keepdims=True))


def crf_partition(feats, mask, transition, sos_idx, eos_idx):
    """feats: (S, B, C), mask: (S, B), transition: (C, C) -> (B,) f32 log partition."""
    seq_len, batch, n_class = feats.shape
    feats = feats.astype(jnp.float32)
    mask = mask.astype(jnp.float32)
    transition = transition.astype(jnp.float32)

    # ---- padding: batch to a multiple of 128 (lane-dense), time to a multiple of t_block.
    b_pad = max(128, _cdiv(batch, 128) * 128)
    n_tb = max(1, _cdiv(seq_len, 32))          # number of seq blocks
    t_block = _cdiv(seq_len, n_tb)             # balanced block size <= 32
    s_pad = n_tb * t_block
    if b_pad != batch or s_pad != seq_len:
        # Padded timesteps / batch columns get mask=0, which leaves alpha untouched.
        feats = jnp.pad(feats, ((0, s_pad - seq_len), (0, b_pad - batch), (0, 0)))
        mask = jnp.pad(mask, ((0, s_pad - seq_len), (0, b_pad - batch)))

    # ---- layout plumbing (wrapper): batch on the lane axis everywhere.
    # TODO(synk): produce feats as (S, C, B) upstream to avoid this extra HBM pass.
    featsT = jnp.transpose(feats, (0, 2, 1))                     # (S, C, B)
    mask3 = mask.reshape(s_pad, 1, b_pad)                        # (S, 1, B)

    # ---- loop-invariant factorization of the transition matrix.
    cmax = jnp.max(transition, axis=1, keepdims=True)            # (C, 1)   max over prev
    expT = jnp.exp(transition - cmax)                            # (C_next, C_prev), in [0, 1]
    eos_col = transition[eos_idx, :].reshape(n_class, 1)         # (C, 1)   transition[EOS, tag]

    bt = _pick_batch_block(b_pad)
    nb = b_pad // bt

    kernel = functools.partial(crf_forward_kernel, sos_idx=sos_idx, t_block=t_block)
    out = pl.pallas_call(
        kernel,
        out_shape=jax.ShapeDtypeStruct((1, b_pad), jnp.float32),
        grid=(nb, n_tb),
        in_specs=[
            pl.BlockSpec((t_block, n_class, bt), lambda b, t: (t, 0, b)),  # feats block
            pl.BlockSpec((t_block, 1, bt), lambda b, t: (t, 0, b)),        # mask block
            pl.BlockSpec((n_class, n_class), lambda b, t: (0, 0)),         # expT (resident)
            pl.BlockSpec((n_class, 1), lambda b, t: (0, 0)),               # cmax (resident)
            pl.BlockSpec((n_class, 1), lambda b, t: (0, 0)),               # eos col (resident)
        ],
        out_specs=pl.BlockSpec((1, bt), lambda b, t: (0, b)),
        scratch_shapes=[pltpu.VMEM((n_class, bt), jnp.float32)],
        compiler_params=pltpu.CompilerParams(
            dimension_semantics=("parallel", "arbitrary"),
            vmem_limit_bytes=32 * 1024 * 1024,   # stays inside v7x's 32 MiB scoped default
        ),
    )(featsT, mask3, expT, cmax, eos_col)
    return out[0, :batch]


def crf_partition_ref(feats, mask, transition, sos_idx, eos_idx):
    """Pure-JAX reference matching the PyTorch forward()."""
    seq_len, batch, n_class = feats.shape
    alpha = jnp.full((batch, n_class), -10000.0, dtype=jnp.float32)
    alpha = alpha.at[:, sos_idx].set(0.0)
    for t in range(seq_len):
        score = alpha[:, None, :] + transition[None, :, :] + feats[t][:, :, None]
        new_alpha = jax.scipy.special.logsumexp(score, axis=-1)
        m_t = mask[t][:, None]
        alpha = new_alpha * m_t + alpha * (1.0 - m_t)
    alpha = alpha + transition[eos_idx][None, :]
    return jax.scipy.special.logsumexp(alpha, axis=-1)


def _make_inputs(key, seq_len, batch, n_class, sos, eos):
    k_trans, k_feats = jax.random.split(key)
    # Parameter init mirroring reset_parameters(): normal, then SOS row / EOS col = -10000.
    transition = jax.random.normal(k_trans, (n_class, n_class), dtype=jnp.float32)
    transition = transition.at[sos, :].set(-10000.0)
    transition = transition.at[:, eos].set(-10000.0)
    feats = jax.random.normal(k_feats, (seq_len, batch, n_class), dtype=jnp.float32)
    # Deterministic varying lengths -> contiguous 0/1 mask (time-major), like PyTorch usage.
    lengths = (jnp.arange(batch, dtype=jnp.int32) % seq_len) + 1
    t_idx = jnp.arange(seq_len, dtype=jnp.int32)[:, None]
    mask = (t_idx < lengths[None, :]).astype(jnp.float32)        # (seq_len, batch)
    return feats, mask, transition


if __name__ == "__main__":
    tag2id = {"O": 0, "B": 1, "I": 2, "E": 3, "S": 4, "X": 5, "<SOS>": 6, "<EOS>": 7}
    n_class = len(tag2id)             # 8
    sos, eos = tag2id["<SOS>"], tag2id["<EOS>"]

    key = jax.random.PRNGKey(0)
    k1, k2, k3 = jax.random.split(key, 3)

    # Tolerance has headroom for MXU f32-emulated contraction while remaining far tighter
    # than any real indexing / orientation bug (which shifts results by O(1)+).
    ATOL, RTOL = 2e-2, 5e-3

    # Test 1: tiny batch (padded to one 128-lane tile), single time block.
    feats, mask, transition = _make_inputs(k1, seq_len=8, batch=4, n_class=n_class,
                                           sos=sos, eos=eos)
    out = crf_partition(feats, mask, transition, sos, eos)
    jax.block_until_ready(out)
    ref = crf_partition_ref(feats, mask, transition, sos, eos)
    assert out.shape == (4,)
    assert jnp.allclose(out, ref, atol=ATOL, rtol=RTOL), (out, ref)

    # Test 2: batch=384 -> three 128-wide batch tiles (exercises the parallel batch axis).
    feats2, mask2, transition2 = _make_inputs(k2, seq_len=8, batch=384, n_class=n_class,
                                              sos=sos, eos=eos)
    out2 = crf_partition(feats2, mask2, transition2, sos, eos)
    jax.block_until_ready(out2)
    ref2 = crf_partition_ref(feats2, mask2, transition2, sos, eos)
    assert out2.shape == (384,)
    assert jnp.allclose(out2, ref2, atol=ATOL, rtol=RTOL)

    # Test 3: seq_len=40 -> two time blocks of 20 (exercises alpha carry across seq blocks).
    feats3, mask3, transition3 = _make_inputs(k3, seq_len=40, batch=128, n_class=n_class,
                                              sos=sos, eos=eos)
    out3 = crf_partition(feats3, mask3, transition3, sos, eos)
    jax.block_until_ready(out3)
    ref3 = crf_partition_ref(feats3, mask3, transition3, sos, eos)
    assert out3.shape == (128,)
    assert jnp.allclose(out3, ref3, atol=ATOL, rtol=RTOL)

    print("KERNEL_OK")
</pallas_src>

<mosaic_0001>
module attributes {stable_mosaic.version = 11 : i64} {
  func.func @crf_forward_kernel(%arg0: i32, %arg1: i32, %arg2: memref<8x8x128xf32, #tpu.memory_space<vmem>>, %arg3: memref<8x1x128xf32, #tpu.memory_space<vmem>>, %arg4: memref<8x8xf32, #tpu.memory_space<vmem>>, %arg5: memref<8x1xf32, #tpu.memory_space<vmem>>, %arg6: memref<8x1xf32, #tpu.memory_space<vmem>>, %arg7: memref<1x128xf32, #tpu.memory_space<vmem>>, %arg8: memref<8x128xf32, #tpu.memory_space<vmem>>) attributes {dimension_semantics = [#tpu.dimension_semantics<parallel>, #tpu.dimension_semantics<arbitrary>], iteration_bounds = array<i64: 1, 1>, scalar_prefetch = 0 : i64, scratch_operands = 1 : i64, tpu.core_type = #tpu.core_type<tc>, window_params = [{transform_indices = @transform_0, window_bounds = array<i64: 8, 8, 128>}, {transform_indices = @transform_1, window_bounds = array<i64: 8, 1, 128>}, {pipeline_mode = #tpu.pipeline_mode<synchronous>, transform_indices = @transform_2, window_bounds = array<i64: 8, 8>}, {pipeline_mode = #tpu.pipeline_mode<synchronous>, transform_indices = @transform_3, window_bounds = array<i64: 8, 1>}, {pipeline_mode = #tpu.pipeline_mode<synchronous>, transform_indices = @transform_4, window_bounds = array<i64: 8, 1>}, {transform_indices = @transform_5, window_bounds = array<i64: 1, 128>}]} {
    %c0_i32 = arith.constant 0 : i32
    %0 = arith.cmpi eq, %arg1, %c0_i32 : i32
    %1 = arith.extui %0 : i1 to i32
    %c0_i32_0 = arith.constant 0 : i32
    %2 = arith.cmpi ne, %1, %c0_i32_0 : i32
    scf.if %2 {
      %178 = tpu.iota {dimensions = array<i32: 0>} : vector<8x128xi32>
      %c6_i32 = arith.constant 6 : i32
      %179 = vector.broadcast %c6_i32 : i32 to vector<8x128xi32>
      %180 = arith.cmpi eq, %178, %179 : vector<8x128xi32>
      %cst_74 = arith.constant 0.000000e+00 : f32
      %cst_75 = arith.constant -1.000000e+04 : f32
      %181 = vector.broadcast %cst_74 : f32 to vector<8x128xf32>
      %182 = vector.broadcast %cst_75 : f32 to vector<8x128xf32>
      %183 = arith.select %180, %181, %182 : vector<8x128xi1>, vector<8x128xf32>
      %c0_76 = arith.constant 0 : index
      %c0_77 = arith.constant 0 : index
      %184 = vector.load %arg8[%c0_76, %c0_77] : memref<8x128xf32, #tpu.memory_space<vmem>>, vector<8x128xf32>
      tpu.vector_store %arg8[%c0_76, %c0_77], %183 {strides = array<i32>} : memref<8x128xf32, #tpu.memory_space<vmem>>, vector<8x128xf32>,
    } else {
    }
    %c0 = arith.constant 0 : index
    %c0_1 = arith.constant 0 : index
    %3 = vector.load %arg4[%c0, %c0_1] : memref<8x8xf32, #tpu.memory_space<vmem>>, vector<8x8xf32>
    %c0_2 = arith.constant 0 : index
    %c0_3 = arith.constant 0 : index
    %4 = vector.load %arg5[%c0_2, %c0_3] : memref<8x1xf32, #tpu.memory_space<vmem>>, vector<8x1xf32>
    %c0_4 = arith.constant 0 : index
    %c0_5 = arith.constant 0 : index
    %5 = vector.load %arg8[%c0_4, %c0_5] : memref<8x128xf32, #tpu.memory_space<vmem>>, vector<8x128xf32>
    %c0_6 = arith.constant 0 : index
    %c0_7 = arith.constant 0 : index
    %c0_8 = arith.constant 0 : index
    %6 = vector.load %arg2[%c0_6, %c0_7, %c0_8] : memref<8x8x128xf32, #tpu.memory_space<vmem>>, vector<1x8x128xf32>
    %7 = vector.shape_cast %6 : vector<1x8x128xf32> to vector<8x128xf32>
    %c0_9 = arith.constant 0 : index
    %c0_10 = arith.constant 0 : index
    %c0_11 = arith.constant 0 : index
    %8 = vector.load %arg3[%c0_9, %c0_10, %c0_11] : memref<8x1x128xf32, #tpu.memory_space<vmem>>, vector<1x1x128xf32>
    %9 = vector.shape_cast %8 : vector<1x1x128xf32> to vector<1x128xf32>
    %cst = arith.constant dense<0xFF800000> : vector<128xf32>
    %10 = vector.multi_reduction <maximumf>, %5, %cst [0] : vector<8x128xf32> to vector<128xf32>
    %11 = vector.shape_cast %10 : vector<128xf32> to vector<1x128xf32>
    %12 = vector.broadcast %11 : vector<1x128xf32> to vector<8x128xf32>
    %13 = arith.subf %5, %12 : vector<8x128xf32>
    %14 = math.exp %13 : vector<8x128xf32>
    %cst_12 = arith.constant dense<0.000000e+00> : vector<8x128xf32>
    %15 = tpu.matmul %3, %14, %cst_12 {dimension_numbers = #tpu.dot_dimension_numbers<[1], [0], [0], [1], [0, 0, 1, 1], [], []>, precision = #tpu.contract_precision<fp32>} : vector<8x8xf32>, vector<8x128xf32>, vector<8x128xf32> -> vector<8x128xf32>
    %16 = vector.broadcast %11 : vector<1x128xf32> to vector<8x128xf32>
    %17 = arith.addf %7, %16 : vector<8x128xf32>
    %18 = vector.broadcast %4 : vector<8x1xf32> to vector<8x128xf32>
    %19 = arith.addf %17, %18 : vector<8x128xf32>
    %20 = math.log %15 : vector<8x128xf32>
    %21 = arith.addf %19, %20 : vector<8x128xf32>
    %cst_13 = arith.constant 0.000000e+00 : f32
    %22 = vector.broadcast %cst_13 : f32 to vector<1x128xf32>
    %23 = arith.cmpf ogt, %9, %22 : vector<1x128xf32>
    %24 = vector.shape_cast %23 : vector<1x128xi1> to vector<1x128xi1>
    %25 = vector.broadcast %24 : vector<1x128xi1> to vector<8x128xi1>
    %26 = arith.select %25, %21, %5 : vector<8x128xi1>, vector<8x128xf32>
    %c1 = arith.constant 1 : index
    %c0_14 = arith.constant 0 : index
    %c0_15 = arith.constant 0 : index
    %27 = vector.load %arg2[%c1, %c0_14, %c0_15] : memref<8x8x128xf32, #tpu.memory_space<vmem>>, vector<1x8x128xf32>
    %28 = vector.shape_cast %27 : vector<1x8x128xf32> to vector<8x128xf32>
    %c1_16 = arith.constant 1 : index
    %c0_17 = arith.constant 0 : index
    %c0_18 = arith.constant 0 : index
    %29 = vector.load %arg3[%c1_16, %c0_17, %c0_18] : memref<8x1x128xf32, #tpu.memory_space<vmem>>, vector<1x1x128xf32>
    %30 = vector.shape_cast %29 : vector<1x1x128xf32> to vector<1x128xf32>
    %cst_19 = arith.constant dense<0xFF800000> : vector<128xf32>
    %31 = vector.multi_reduction <maximumf>, %26, %cst_19 [0] : vector<8x128xf32> to vector<128xf32>
    %32 = vector.shape_cast %31 : vector<128xf32> to vector<1x128xf32>
    %33 = vector.broadcast %32 : vector<1x128xf32> to vector<8x128xf32>
    %34 = arith.subf %26, %33 : vector<8x128xf32>
    %35 = math.exp %34 : vector<8x128xf32>
    %cst_20 = arith.constant dense<0.000000e+00> : vector<8x128xf32>
    %36 = tpu.matmul %3, %35, %cst_20 {dimension_numbers = #tpu.dot_dimension_numbers<[1], [0], [0], [1], [0, 0, 1, 1], [], []>, precision = #tpu.contract_precision<fp32>} : vector<8x8xf32>, vector<8x128xf32>, vector<8x128xf32> -> vector<8x128xf32>
    %37 = vector.broadcast %32 : vector<1x128xf32> to vector<8x128xf32>
    %38 = arith.addf %28, %37 : vector<8x128xf32>
    %39 = vector.broadcast %4 : vector<8x1xf32> to vector<8x128xf32>
    %40 = arith.addf %38, %39 : vector<8x128xf32>
    %41 = math.log %36 : vector<8x128xf32>
    %42 = arith.addf %40, %41 : vector<8x128xf32>
    %cst_21 = arith.constant 0.000000e+00 : f32
    %43 = vector.broadcast %cst_21 : f32 to vector<1x128xf32>
    %44 = arith.cmpf ogt, %30, %43 : vector<1x128xf32>
    %45 = vector.shape_cast %44 : vector<1x128xi1> to vector<1x128xi1>
    %46 = vector.broadcast %45 : vector<1x128xi1> to vector<8x128xi1>
    %47 = arith.select %46, %42, %26 : vector<8x128xi1>, vector<8x128xf32>
    %c2 = arith.constant 2 : index
    %c0_22 = arith.constant 0 : index
    %c0_23 = arith.constant 0 : index
    %48 = vector.load %arg2[%c2, %c0_22, %c0_23] : memref<8x8x128xf32, #tpu.memory_space<vmem>>, vector<1x8x128xf32>
    %49 = vector.shape_cast %48 : vector<1x8x128xf32> to vector<8x128xf32>
    %c2_24 = arith.constant 2 : index
    %c0_25 = arith.constant 0 : index
    %c0_26 = arith.constant 0 : index
    %50 = vector.load %arg3[%c2_24, %c0_25, %c0_26] : memref<8x1x128xf32, #tpu.memory_space<vmem>>, vector<1x1x128xf32>
    %51 = vector.shape_cast %50 : vector<1x1x128xf32> to vector<1x128xf32>
    %cst_27 = arith.constant dense<0xFF800000> : vector<128xf32>
    %52 = vector.multi_reduction <maximumf>, %47, %cst_27 [0] : vector<8x128xf32> to vector<128xf32>
    %53 = vector.shape_cast %52 : vector<128xf32> to vector<1x128xf32>
    %54 = vector.broadcast %53 : vector<1x128xf32> to vector<8x128xf32>
    %55 = arith.subf %47, %54 : vector<8x128xf32>
    %56 = math.exp %55 : vector<8x128xf32>
    %cst_28 = arith.constant dense<0.000000e+00> : vector<8x128xf32>
    %57 = tpu.matmul %3, %56, %cst_28 {dimension_numbers = #tpu.dot_dimension_numbers<[1], [0], [0], [1], [0, 0, 1, 1], [], []>, precision = #tpu.contract_precision<fp32>} : vector<8x8xf32>, vector<8x128xf32>, vector<8x128xf32> -> vector<8x128xf32>
    %58 = vector.broadcast %53 : vector<1x128xf32> to vector<8x128xf32>
    %59 = arith.addf %49, %58 : vector<8x128xf32>
    %60 = vector.broadcast %4 : vector<8x1xf32> to vector<8x128xf32>
    %61 = arith.addf %59, %60 : vector<8x128xf32>
    %62 = math.log %57 : vector<8x128xf32>
    %63 = arith.addf %61, %62 : vector<8x128xf32>
    %cst_29 = arith.constant 0.000000e+00 : f32
    %64 = vector.broadcast %cst_29 : f32 to vector<1x128xf32>
    %65 = arith.cmpf ogt, %51, %64 : vector<1x128xf32>
    %66 = vector.shape_cast %65 : vector<1x128xi1> to vector<1x128xi1>
    %67 = vector.broadcast %66 : vector<1x128xi1> to vector<8x128xi1>
    %68 = arith.select %67, %63, %47 : vector<8x128xi1>, vector<8x128xf32>
    %c3 = arith.constant 3 : index
    %c0_30 = arith.constant 0 : index
    %c0_31 = arith.constant 0 : index
    %69 = vector.load %arg2[%c3, %c0_30, %c0_31] : memref<8x8x128xf32, #tpu.memory_space<vmem>>, vector<1x8x128xf32>
    %70 = vector.shape_cast %69 : vector<1x8x128xf32> to vector<8x128xf32>
    %c3_32 = arith.constant 3 : index
    %c0_33 = arith.constant 0 : index
    %c0_34 = arith.constant 0 : index
    %71 = vector.load %arg3[%c3_32, %c0_33, %c0_34] : memref<8x1x128xf32, #tpu.memory_space<vmem>>, vector<1x1x128xf32>
    %72 = vector.shape_cast %71 : vector<1x1x128xf32> to vector<1x128xf32>
    %cst_35 = arith.constant dense<0xFF800000> : vector<128xf32>
    %73 = vector.multi_reduction <maximumf>, %68, %cst_35 [0] : vector<8x128xf32> to vector<128xf32>
    %74 = vector.shape_cast %73 : vector<128xf32> to vector<1x128xf32>
    %75 = vector.broadcast %74 : vector<1x128xf32> to vector<8x128xf32>
    %76 = arith.subf %68, %75 : vector<8x128xf32>
    %77 = math.exp %76 : vector<8x128xf32>
    %cst_36 = arith.constant dense<0.000000e+00> : vector<8x128xf32>
    %78 = tpu.matmul %3, %77, %cst_36 {dimension_numbers = #tpu.dot_dimension_numbers<[1], [0], [0], [1], [0, 0, 1, 1], [], []>, precision = #tpu.contract_precision<fp32>} : vector<8x8xf32>, vector<8x128xf32>, vector<8x128xf32> -> vector<8x128xf32>
    %79 = vector.broadcast %74 : vector<1x128xf32> to vector<8x128xf32>
    %80 = arith.addf %70, %79 : vector<8x128xf32>
    %81 = vector.broadcast %4 : vector<8x1xf32> to vector<8x128xf32>
    %82 = arith.addf %80, %81 : vector<8x128xf32>
    %83 = math.log %78 : vector<8x128xf32>
    %84 = arith.addf %82, %83 : vector<8x128xf32>
    %cst_37 = arith.constant 0.000000e+00 : f32
    %85 = vector.broadcast %cst_37 : f32 to vector<1x128xf32>
    %86 = arith.cmpf ogt, %72, %85 : vector<1x128xf32>
    %87 = vector.shape_cast %86 : vector<1x128xi1> to vector<1x128xi1>
    %88 = vector.broadcast %87 : vector<1x128xi1> to vector<8x128xi1>
    %89 = arith.select %88, %84, %68 : vector<8x128xi1>, vector<8x128xf32>
    %c4 = arith.constant 4 : index
    %c0_38 = arith.constant 0 : index
    %c0_39 = arith.constant 0 : index
    %90 = vector.load %arg2[%c4, %c0_38, %c0_39] : memref<8x8x128xf32, #tpu.memory_space<vmem>>, vector<1x8x128xf32>
    %91 = vector.shape_cast %90 : vector<1x8x128xf32> to vector<8x128xf32>
    %c4_40 = arith.constant 4 : index
    %c0_41 = arith.constant 0 : index
    %c0_42 = arith.constant 0 : index
    %92 = vector.load %arg3[%c4_40, %c0_41, %c0_42] : memref<8x1x128xf32, #tpu.memory_space<vmem>>, vector<1x1x128xf32>
    %93 = vector.shape_cast %92 : vector<1x1x128xf32> to vector<1x128xf32>
    %cst_43 = arith.constant dense<0xFF800000> : vector<128xf32>
    %94 = vector.multi_reduction <maximumf>, %89, %cst_43 [0] : vector<8x128xf32> to vector<128xf32>
    %95 = vector.shape_cast %94 : vector<128xf32> to vector<1x128xf32>
    %96 = vector.broadcast %95 : vector<1x128xf32> to vector<8x128xf32>
    %97 = arith.subf %89, %96 : vector<8x128xf32>
    %98 = math.exp %97 : vector<8x128xf32>
    %cst_44 = arith.constant dense<0.000000e+00> : vector<8x128xf32>
    %99 = tpu.matmul %3, %98, %cst_44 {dimension_numbers = #tpu.dot_dimension_numbers<[1], [0], [0], [1], [0, 0, 1, 1], [], []>, precision = #tpu.contract_precision<fp32>} : vector<8x8xf32>, vector<8x128xf32>, vector<8x128xf32> -> vector<8x128xf32>
    %100 = vector.broadcast %95 : vector<1x128xf32> to vector<8x128xf32>
    %101 = arith.addf %91, %100 : vector<8x128xf32>
    %102 = vector.broadcast %4 : vector<8x1xf32> to vector<8x128xf32>
    %103 = arith.addf %101, %102 : vector<8x128xf32>
    %104 = math.log %99 : vector<8x128xf32>
    %105 = arith.addf %103, %104 : vector<8x128xf32>
    %cst_45 = arith.constant 0.000000e+00 : f32
    %106 = vector.broadcast %cst_45 : f32 to vector<1x128xf32>
    %107 = arith.cmpf ogt, %93, %106 : vector<1x128xf32>
    %108 = vector.shape_cast %107 : vector<1x128xi1> to vector<1x128xi1>
    %109 = vector.broadcast %108 : vector<1x128xi1> to vector<8x128xi1>
    %110 = arith.select %109, %105, %89 : vector<8x128xi1>, vector<8x128xf32>
    %c5 = arith.constant 5 : index
    %c0_46 = arith.constant 0 : index
    %c0_47 = arith.constant 0 : index
    %111 = vector.load %arg2[%c5, %c0_46, %c0_47] : memref<8x8x128xf32, #tpu.memory_space<vmem>>, vector<1x8x128xf32>
    %112 = vector.shape_cast %111 : vector<1x8x128xf32> to vector<8x128xf32>
    %c5_48 = arith.constant 5 : index
    %c0_49 = arith.constant 0 : index
    %c0_50 = arith.constant 0 : index
    %113 = vector.load %arg3[%c5_48, %c0_49, %c0_50] : memref<8x1x128xf32, #tpu.memory_space<vmem>>, vector<1x1x128xf32>
    %114 = vector.shape_cast %113 : vector<1x1x128xf32> to vector<1x128xf32>
    %cst_51 = arith.constant dense<0xFF800000> : vector<128xf32>
    %115 = vector.multi_reduction <maximumf>, %110, %cst_51 [0] : vector<8x128xf32> to vector<128xf32>
    %116 = vector.shape_cast %115 : vector<128xf32> to vector<1x128xf32>
    %117 = vector.broadcast %116 : vector<1x128xf32> to vector<8x128xf32>
    %118 = arith.subf %110, %117 : vector<8x128xf32>
    %119 = math.exp %118 : vector<8x128xf32>
    %cst_52 = arith.constant dense<0.000000e+00> : vector<8x128xf32>
    %120 = tpu.matmul %3, %119, %cst_52 {dimension_numbers = #tpu.dot_dimension_numbers<[1], [0], [0], [1], [0, 0, 1, 1], [], []>, precision = #tpu.contract_precision<fp32>} : vector<8x8xf32>, vector<8x128xf32>, vector<8x128xf32> -> vector<8x128xf32>
    %121 = vector.broadcast %116 : vector<1x128xf32> to vector<8x128xf32>
    %122 = arith.addf %112, %121 : vector<8x128xf32>
    %123 = vector.broadcast %4 : vector<8x1xf32> to vector<8x128xf32>
    %124 = arith.addf %122, %123 : vector<8x128xf32>
    %125 = math.log %120 : vector<8x128xf32>
    %126 = arith.addf %124, %125 : vector<8x128xf32>
    %cst_53 = arith.constant 0.000000e+00 : f32
    %127 = vector.broadcast %cst_53 : f32 to vector<1x128xf32>
    %128 = arith.cmpf ogt, %114, %127 : vector<1x128xf32>
    %129 = vector.shape_cast %128 : vector<1x128xi1> to vector<1x128xi1>
    %130 = vector.broadcast %129 : vector<1x128xi1> to vector<8x128xi1>
    %131 = arith.select %130, %126, %110 : vector<8x128xi1>, vector<8x128xf32>
    %c6 = arith.constant 6 : index
    %c0_54 = arith.constant 0 : index
    %c0_55 = arith.constant 0 : index
    %132 = vector.load %arg2[%c6, %c0_54, %c0_55] : memref<8x8x128xf32, #tpu.memory_space<vmem>>, vector<1x8x128xf32>
    %133 = vector.shape_cast %132 : vector<1x8x128xf32> to vector<8x128xf32>
    %c6_56 = arith.constant 6 : index
    %c0_57 = arith.constant 0 : index
    %c0_58 = arith.constant 0 : index
    %134 = vector.load %arg3[%c6_56, %c0_57, %c0_58] : memref<8x1x128xf32, #tpu.memory_space<vmem>>, vector<1x1x128xf32>
    %135 = vector.shape_cast %134 : vector<1x1x128xf32> to vector<1x128xf32>
    %cst_59 = arith.constant dense<0xFF800000> : vector<128xf32>
    %136 = vector.multi_reduction <maximumf>, %131, %cst_59 [0] : vector<8x128xf32> to vector<128xf32>
    %137 = vector.shape_cast %136 : vector<128xf32> to vector<1x128xf32>
    %138 = vector.broadcast %137 : vector<1x128xf32> to vector<8x128xf32>
    %139 = arith.subf %131, %138 : vector<8x128xf32>
    %140 = math.exp %139 : vector<8x128xf32>
    %cst_60 = arith.constant dense<0.000000e+00> : vector<8x128xf32>
    %141 = tpu.matmul %3, %140, %cst_60 {dimension_numbers = #tpu.dot_dimension_numbers<[1], [0], [0], [1], [0, 0, 1, 1], [], []>, precision = #tpu.contract_precision<fp32>} : vector<8x8xf32>, vector<8x128xf32>, vector<8x128xf32> -> vector<8x128xf32>
    %142 = vector.broadcast %137 : vector<1x128xf32> to vector<8x128xf32>
    %143 = arith.addf %133, %142 : vector<8x128xf32>
    %144 = vector.broadcast %4 : vector<8x1xf32> to vector<8x128xf32>
    %145 = arith.addf %143, %144 : vector<8x128xf32>
    %146 = math.log %141 : vector<8x128xf32>
    %147 = arith.addf %145, %146 : vector<8x128xf32>
    %cst_61 = arith.constant 0.000000e+00 : f32
    %148 = vector.broadcast %cst_61 : f32 to vector<1x128xf32>
    %149 = arith.cmpf ogt, %135, %148 : vector<1x128xf32>
    %150 = vector.shape_cast %149 : vector<1x128xi1> to vector<1x128xi1>
    %151 = vector.broadcast %150 : vector<1x128xi1> to vector<8x128xi1>
    %152 = arith.select %151, %147, %131 : vector<8x128xi1>, vector<8x128xf32>
    %c7 = arith.constant 7 : index
    %c0_62 = arith.constant 0 : index
    %c0_63 = arith.constant 0 : index
    %153 = vector.load %arg2[%c7, %c0_62, %c0_63] : memref<8x8x128xf32, #tpu.memory_space<vmem>>, vector<1x8x128xf32>
    %154 = vector.shape_cast %153 : vector<1x8x128xf32> to vector<8x128xf32>
    %c7_64 = arith.constant 7 : index
    %c0_65 = arith.constant 0 : index
    %c0_66 = arith.constant 0 : index
    %155 = vector.load %arg3[%c7_64, %c0_65, %c0_66] : memref<8x1x128xf32, #tpu.memory_space<vmem>>, vector<1x1x128xf32>
    %156 = vector.shape_cast %155 : vector<1x1x128xf32> to vector<1x128xf32>
    %cst_67 = arith.constant dense<0xFF800000> : vector<128xf32>
    %157 = vector.multi_reduction <maximumf>, %152, %cst_67 [0] : vector<8x128xf32> to vector<128xf32>
    %158 = vector.shape_cast %157 : vector<128xf32> to vector<1x128xf32>
    %159 = vector.broadcast %158 : vector<1x128xf32> to vector<8x128xf32>
    %160 = arith.subf %152, %159 : vector<8x128xf32>
    %161 = math.exp %160 : vector<8x128xf32>
    %cst_68 = arith.constant dense<0.000000e+00> : vector<8x128xf32>
    %162 = tpu.matmul %3, %161, %cst_68 {dimension_numbers = #tpu.dot_dimension_numbers<[1], [0], [0], [1], [0, 0, 1, 1], [], []>, precision = #tpu.contract_precision<fp32>} : vector<8x8xf32>, vector<8x128xf32>, vector<8x128xf32> -> vector<8x128xf32>
    %163 = vector.broadcast %158 : vector<1x128xf32> to vector<8x128xf32>
    %164 = arith.addf %154, %163 : vector<8x128xf32>
    %165 = vector.broadcast %4 : vector<8x1xf32> to vector<8x128xf32>
    %166 = arith.addf %164, %165 : vector<8x128xf32>
    %167 = math.log %162 : vector<8x128xf32>
    %168 = arith.addf %166, %167 : vector<8x128xf32>
    %cst_69 = arith.constant 0.000000e+00 : f32
    %169 = vector.broadcast %cst_69 : f32 to vector<1x128xf32>
    %170 = arith.cmpf ogt, %156, %169 : vector<1x128xf32>
    %171 = vector.shape_cast %170 : vector<1x128xi1> to vector<1x128xi1>
    %172 = vector.broadcast %171 : vector<1x128xi1> to vector<8x128xi1>
    %173 = arith.select %172, %168, %152 : vector<8x128xi1>, vector<8x128xf32>
    %c0_70 = arith.constant 0 : index
    %c0_71 = arith.constant 0 : index
    %174 = vector.load %arg8[%c0_70, %c0_71] : memref<8x128xf32, #tpu.memory_space<vmem>>, vector<8x128xf32>
    tpu.vector_store %arg8[%c0_70, %c0_71], %173 {strides = array<i32>} : memref<8x128xf32, #tpu.memory_space<vmem>>, vector<8x128xf32>,
    %c0_i32_72 = arith.constant 0 : i32
    %175 = arith.cmpi eq, %arg1, %c0_i32_72 : i32
    %176 = arith.extui %175 : i1 to i32
    %c0_i32_73 = arith.constant 0 : i32
    %177 = arith.cmpi ne, %176, %c0_i32_73 : i32
    scf.if %177 {
      %c0_74 = arith.constant 0 : index
      %c0_75 = arith.constant 0 : index
      %178 = vector.load %arg6[%c0_74, %c0_75] : memref<8x1xf32, #tpu.memory_space<vmem>>, vector<8x1xf32>
      %179 = vector.broadcast %178 : vector<8x1xf32> to vector<8x128xf32>
      %180 = arith.addf %173, %179 : vector<8x128xf32>
      %cst_76 = arith.constant dense<0xFF800000> : vector<128xf32>
      %181 = vector.multi_reduction <maximumf>, %180, %cst_76 [0] : vector<8x128xf32> to vector<128xf32>
      %182 = vector.shape_cast %181 : vector<128xf32> to vector<1x128xf32>
      %183 = vector.broadcast %182 : vector<1x128xf32> to vector<8x128xf32>
      %184 = arith.subf %180, %183 : vector<8x128xf32>
      %185 = math.exp %184 : vector<8x128xf32>
      %cst_77 = arith.constant dense<0.000000e+00> : vector<128xf32>
      %186 = vector.multi_reduction <add>, %185, %cst_77 [0] : vector<8x128xf32> to vector<128xf32>
      %187 = vector.shape_cast %186 : vector<128xf32> to vector<1x128xf32>
      %188 = math.log %187 : vector<1x128xf32>
      %189 = arith.addf %182, %188 : vector<1x128xf32>
      %c0_78 = arith.constant 0 : index
      %c0_79 = arith.constant 0 : index
      %190 = vector.load %arg7[%c0_78, %c0_79] : memref<1x128xf32, #tpu.memory_space<vmem>>, vector<1x128xf32>
      tpu.vector_store %arg7[%c0_78, %c0_79], %189 {strides = array<i32>} : memref<1x128xf32, #tpu.memory_space<vmem>>, vector<1x128xf32>,
    } else {
    }
    return
  }
  func.func @transform_0(%arg0: i32, %arg1: i32) -> (i32, i32, i32) {
    %c0_i32 = arith.constant 0 : i32
    %c0_i32_0 = arith.constant 0 : i32
    return %arg1, %c0_i32, %arg0 : i32, i32, i32
  }
  func.func @transform_1(%arg0: i32, %arg1: i32) -> (i32, i32, i32) {
    %c0_i32 = arith.constant 0 : i32
    %c0_i32_0 = arith.constant 0 : i32
    return %arg1, %c0_i32, %arg0 : i32, i32, i32
  }
  func.func @transform_2(%arg0: i32, %arg1: i32) -> (i32, i32) {
    %c0_i32 = arith.constant 0 : i32
    %c0_i32_0 = arith.constant 0 : i32
    %c0_i32_1 = arith.constant 0 : i32
    return %c0_i32, %c0_i32_0 : i32, i32
  }
  func.func @transform_3(%arg0: i32, %arg1: i32) -> (i32, i32) {
    %c0_i32 = arith.constant 0 : i32
    %c0_i32_0 = arith.constant 0 : i32
    %c0_i32_1 = arith.constant 0 : i32
    return %c0_i32, %c0_i32_0 : i32, i32
  }
  func.func @transform_4(%arg0: i32, %arg1: i32) -> (i32, i32) {
    %c0_i32 = arith.constant 0 : i32
    %c0_i32_0 = arith.constant 0 : i32
    %c0_i32_1 = arith.constant 0 : i32
    return %c0_i32, %c0_i32_0 : i32, i32
  }
  func.func @transform_5(%arg0: i32, %arg1: i32) -> (i32, i32) {
    %c0_i32 = arith.constant 0 : i32
    %c0_i32_0 = arith.constant 0 : i32
    return %c0_i32, %arg0 : i32, i32
  }
}

</mosaic_0001>

<llo_original>
// kernel: tpu_custom_call.1
$region0: #{tpu_custom_call.1}
  #allocation0 [shape = 'u32[]', space=smem, size = 0x4, offset = 0x4, fixed_abs, tag = 'smem constant byte address 0x4 - core index']
  #allocation1 [shape = 'u32[72,128]{1,0:T(1,128)}', space=vmem, size = 0x9000, scoped, tag = 'internal scratch']
  #allocation2 [shape = 'f32[8,128]{1,0:T(8,128)}', space=vmem, size = 0x1000, scoped, tag = 'scratch operand']
  %s0 = inlined_call_operand.hbm [shape: f32[8,8,128], index: 0, kind: input, shape index: {}]
  %s1 = inlined_call_operand.vmem [shape: f32[8,1,128], index: 1, kind: input, shape index: {}]
  %s2 = inlined_call_operand.vmem [shape: f32[8,8], index: 2, kind: input, shape index: {}]
  %s3 = inlined_call_operand.vmem [shape: f32[8,1], index: 3, kind: input, shape index: {}]
  %s4 = inlined_call_operand.vmem [shape: f32[8,1], index: 4, kind: input, shape index: {}]
  %s5 = inlined_call_operand.hbm [shape: f32[1,128], index: 5, kind: output, shape index: {}]
  %s6 = sld [smem:[#allocation0]]
  $region42: #{tpu_custom_call.1} parent=0
    _
  %s8 = ssub.s32 1, %s6
  %s9 = scalar_select 0, %s8, %s6
  $region1: #{tpu_custom_call.1} parent=0
    #allocation3 [shape = 'u8[32768]{0}', space=vmem, size = 0x8000, scoped, tag = 'input window, operand 0, single buffered']
    #allocation4 [shape = 's32[1]{0}', space=sflag, size = 0x4, scoped, tag = 'scoped memory for tpu_custom_call.1']
    #allocation5 [shape = 's32[1]{0}', space=sflag, size = 0x4, scoped, tag = 'scoped memory for tpu_custom_call.1']
    #allocation6 [shape = 'u8[512]{0}', space=vmem, size = 0x400, scoped, tag = 'output window, operand 0, single buffered']
    %10 = vsyncpa [#allocation4], 0
    %11 = vsyncpa [#allocation5], 0
    // Predicated region
    $region2: #{tpu_custom_call.1} parent=1 // pred_check
      _
    $region3: #{tpu_custom_call.1} parent=1 // pred_check_branch
      %13 = sbr.rel (0) target = $region5
    $region4: #{tpu_custom_call.1} parent=1 // pred_region
      %15 = vsyncadd [#allocation4], 0
      %s16 = sshll.u32 %s0, 4
      %s17 = int_to_ptr.hbm [resolvable:$true] %s16
      %s18 = sshll.u32 [#allocation3], 4
      %s19 = int_to_ptr.vmem [resolvable:$true] %s18
      %24 = dma.hbm_to_vmem [thread:$0]  %s17, 1024, %s19, [#allocation4], 128, 128, 8
    $region5: #{tpu_custom_call.1} parent=1 // pred_fallthru
      _
    // Predicated region
    $region6: #{tpu_custom_call.1} parent=1 // pred_check
      _
    $region7: #{tpu_custom_call.1} parent=1 // pred_check_branch
      %26 = sbr.rel (0) target = $region9
    $region8: #{tpu_custom_call.1} parent=1 // pred_region
      _
    $region9: #{tpu_custom_call.1} parent=1 // pred_fallthru
      _
    // Predicated region
    $region10: #{tpu_custom_call.1} parent=1 // pred_check
      _
    $region11: #{tpu_custom_call.1} parent=1 // pred_check_branch
      %28 = sbr.rel (0) target = $region13
    $region12: #{tpu_custom_call.1} parent=1 // pred_region
      _
    $region13: #{tpu_custom_call.1} parent=1 // pred_fallthru
      _
    // Predicated region
    $region14: #{tpu_custom_call.1} parent=1 // pred_check
      _
    $region15: #{tpu_custom_call.1} parent=1 // pred_check_branch
      %30 = sbr.rel (0) target = $region17
    $region16: #{tpu_custom_call.1} parent=1 // pred_region
      _
    $region17: #{tpu_custom_call.1} parent=1 // pred_fallthru
      _
    // Predicated region
    $region18: #{tpu_custom_call.1} parent=1 // pred_check
      _
    $region19: #{tpu_custom_call.1} parent=1 // pred_check_branch
      %32 = sbr.rel (0) target = $region21
    $region20: #{tpu_custom_call.1} parent=1 // pred_region
      _
    $region21: #{tpu_custom_call.1} parent=1 // pred_fallthru
      _
    // Predicated region
    $region22: #{tpu_custom_call.1} parent=1 // pred_check
      _
    $region23: #{tpu_custom_call.1} parent=1 // pred_check_branch
      %34 = sbr.rel (0) target = $region25
    $region24: #{tpu_custom_call.1} parent=1 // pred_region
      %36 = dma.done [#allocation4], 1024
    $region25: #{tpu_custom_call.1} parent=1 // pred_fallthru
      _
    %p37 = scmp.eq.s32.totalorder 0, 0
    // Predicated region
    $region26: #{tpu_custom_call.1} parent=1 // pred_check
      %p38 = pneg %p37
    $region27: #{tpu_custom_call.1} parent=1 // pred_check_branch
      %40 = sbr.rel (%p38) target = $region29
    $region28: #{tpu_custom_call.1} parent=1 // pred_region
      %v41 = vlaneseq
      %v42 = vshrl.u32 %v41, 7
      %vm43 = vcmp.eq.s32.totalorder %v42, 6
      %v44 = vsel %vm43, 0.0, -10000.0
      %45 = vst [vmem:[#allocation2] sm:$0xff] %v44
    $region29: #{tpu_custom_call.1} parent=1 // pred_fallthru
      _
    %v46 = vld [vmem:[%s2] sm:$0xff]
    %v47 = vld [vmem:[%s3] sm:$0xff]
    %v48 = vld [vmem:[#allocation2] sm:$0xff]
    %v49 = vld [vmem:[#allocation3] sm:$0xff]
    %v50 = vld [vmem:[%s1] sm:$0x1]
    %v51 = vrot.slane %v48, 4
    %v52 = vmax.f32 %v48, %v51
    %v53 = vrot.slane %v52, 2
    %v54 = vmax.f32 %v52, %v53
    %v55 = vrot.slane %v54, 1
    %v56 = vmax.f32 %v54, %v55
    %v57 = vsub.f32 %v48, %v56
    %v58 = vmul.f32 %v57, 1.442695
    %v59 = vpow.pop %v58
    %vm60 = vcmask 64512
    %v62 = vsel %vm60, %v46, 0
    %64 = vmatpush.msra.mxu0 0.0
    %65 = vmatpush.msra.mxu0 0.0
    %66 = vmatpush.msra.mxu0 0.0
    %67 = vmatpush.msra.mxu0 0.0
    %68 = vmatpush.msra.mxu0 0.0
    %69 = vmatpush.msra.mxu0 0.0
    %70 = vmatpush.msra.mxu0 0.0
    %71 = vmatpush.msra.mxu0 0.0
    %72 = vmatpush.msra.mxu0 0.0
    %73 = vmatpush.msra.mxu0 0.0
    %74 = vmatpush.msra.mxu0 0.0
    %75 = vmatpush.msra.mxu0 0.0
    %76 = vmatpush.msra.mxu0 0.0
    %77 = vmatpush.msra.mxu0 0.0
    %78 = vmatpush.msra.mxu0 0.0
    %v79 = vand.u32 %v59, 4294901760
    %80 = vmatpush.msra.mxu0 %v79
    %v81 = vand.u32 %v62, 4294901760
    %v82 = vsub.f32 %v62, %v81
    %v83 = vand.u32 %v82, 4294901760
    %v84 = vsub.f32 %v82, %v83
    %v85 = vand.u32 %v84, 4294901760
    %86 = vmatmul.f32.gmra.mxu0 %v85
    %v87 = vpop.f32.mrf.mxu0
    %v88 = vadd.f32 0.0, %v87
    %89 = vdwg.mxu0
    %90 = vmatpush.msra.mxu0 0.0
    %91 = vmatpush.msra.mxu0 0.0
    %92 = vmatpush.msra.mxu0 0.0
    %93 = vmatpush.msra.mxu0 0.0
    %94 = vmatpush.msra.mxu0 0.0
    %95 = vmatpush.msra.mxu0 0.0
    %96 = vmatpush.msra.mxu0 0.0
    %97 = vmatpush.msra.mxu0 0.0
    %98 = vmatpush.msra.mxu0 0.0
    %99 = vmatpush.msra.mxu0 0.0
    %100 = vmatpush.msra.mxu0 0.0
    %101 = vmatpush.msra.mxu0 0.0
    %102 = vmatpush.msra.mxu0 0.0
    %103 = vmatpush.msra.mxu0 0.0
    %104 = vmatpush.msra.mxu0 0.0
    %v105 = vand.u32 %v59, 4294901760
    %v106 = vsub.f32 %v59, %v105
    %v107 = vand.u32 %v106, 4294901760
    %v108 = vsub.f32 %v106, %v107
    %v109 = vand.u32 %v108, 4294901760
    %110 = vmatpush.msra.mxu0 %v109
    %v111 = vand.u32 %v62, 4294901760
    %112 = vmatmul.f32.gmra.mxu0 %v111
    %v113 = vpop.f32.mrf.mxu0
    %v114 = vadd.f32 %v88, %v113
    %115 = vdwg.mxu0
    %116 = vmatpush.msra.mxu0 0.0
    %117 = vmatpush.msra.mxu0 0.0
    %118 = vmatpush.msra.mxu0 0.0
    %119 = vmatpush.msra.mxu0 0.0
    %120 = vmatpush.msra.mxu0 0.0
    %121 = vmatpush.msra.mxu0 0.0
    %122 = vmatpush.msra.mxu0 0.0
    %123 = vmatpush.msra.mxu0 0.0
    %124 = vmatpush.msra.mxu0 0.0
    %125 = vmatpush.msra.mxu0 0.0
    %126 = vmatpush.msra.mxu0 0.0
    %127 = vmatpush.msra.mxu0 0.0
    %128 = vmatpush.msra.mxu0 0.0
    %129 = vmatpush.msra.mxu0 0.0
    %130 = vmatpush.msra.mxu0 0.0
    %v131 = vand.u32 %v59, 4294901760
    %v132 = vsub.f32 %v59, %v131
    %133 = vmatpush.msra.mxu0 %v132
    %v134 = vand.u32 %v62, 4294901760
    %v135 = vsub.f32 %v62, %v134
    %136 = vmatmul.f32.gmra.mxu0 %v135
    %v137 = vpop.f32.mrf.mxu0
    %v138 = vadd.f32 %v114, %v137
    %139 = vdwg.mxu0
    %140 = vmatpush.msra.mxu0 0.0
    %141 = vmatpush.msra.mxu0 0.0
    %142 = vmatpush.msra.mxu0 0.0
    %143 = vmatpush.msra.mxu0 0.0
    %144 = vmatpush.msra.mxu0 0.0
    %145 = vmatpush.msra.mxu0 0.0
    %146 = vmatpush.msra.mxu0 0.0
    %147 = vmatpush.msra.mxu0 0.0
    %148 = vmatpush.msra.mxu0 0.0
    %149 = vmatpush.msra.mxu0 0.0
    %150 = vmatpush.msra.mxu0 0.0
    %151 = vmatpush.msra.mxu0 0.0
    %152 = vmatpush.msra.mxu0 0.0
    %153 = vmatpush.msra.mxu0 0.0
    %154 = vmatpush.msra.mxu0 0.0
    %v155 = vand.u32 %v59, 4294901760
    %156 = vmatpush.msra.mxu0 %v155
    %v157 = vand.u32 %v62, 4294901760
    %v158 = vsub.f32 %v62, %v157
    %v159 = vand.u32 %v158, 4294901760
    %160 = vmatmul.f32.gmra.mxu0 %v159
    %v161 = vpop.f32.mrf.mxu0
    %v162 = vadd.f32 %v138, %v161
    %163 = vdwg.mxu0
    %164 = vmatpush.msra.mxu0 0.0
    %165 = vmatpush.msra.mxu0 0.0
    %166 = vmatpush.msra.mxu0 0.0
    %167 = vmatpush.msra.mxu0 0.0
    %168 = vmatpush.msra.mxu0 0.0
    %169 = vmatpush.msra.mxu0 0.0
    %170 = vmatpush.msra.mxu0 0.0
    %171 = vmatpush.msra.mxu0 0.0
    %172 = vmatpush.msra.mxu0 0.0
    %173 = vmatpush.msra.mxu0 0.0
    %174 = vmatpush.msra.mxu0 0.0
    %175 = vmatpush.msra.mxu0 0.0
    %176 = vmatpush.msra.mxu0 0.0
    %177 = vmatpush.msra.mxu0 0.0
    %178 = vmatpush.msra.mxu0 0.0
    %v179 = vand.u32 %v59, 4294901760
    %v180 = vsub.f32 %v59, %v179
    %v181 = vand.u32 %v180, 4294901760
    %182 = vmatpush.msra.mxu0 %v181
    %v183 = vand.u32 %v62, 4294901760
    %184 = vmatmul.f32.gmra.mxu0 %v183
    %v185 = vpop.f32.mrf.mxu0
    %v186 = vadd.f32 %v162, %v185
    %187 = vdwg.mxu0
    %188 = vmatpush.msra.mxu0 0.0
    %189 = vmatpush.msra.mxu0 0.0
    %190 = vmatpush.msra.mxu0 0.0
    %191 = vmatpush.msra.mxu0 0.0
    %192 = vmatpush.msra.mxu0 0.0
    %193 = vmatpush.msra.mxu0 0.0
    %194 = vmatpush.msra.mxu0 0.0
    %195 = vmatpush.msra.mxu0 0.0
    %196 = vmatpush.msra.mxu0 0.0
    %197 = vmatpush.msra.mxu0 0.0
    %198 = vmatpush.msra.mxu0 0.0
    %199 = vmatpush.msra.mxu0 0.0
    %200 = vmatpush.msra.mxu0 0.0
    %201 = vmatpush.msra.mxu0 0.0
    %202 = vmatpush.msra.mxu0 0.0
    %v203 = vand.u32 %v59, 4294901760
    %204 = vmatpush.msra.mxu0 %v203
    %v205 = vand.u32 %v62, 4294901760
    %206 = vmatmul.f32.gmra.mxu0 %v205
    %v207 = vpop.f32.mrf.mxu0
    %v208 = vadd.f32 %v186, %v207
    %209 = vdwg.mxu0
    %v210 = vadd.f32 %v49, %v56
    %212 = vset.pattern.permute.xlu0 0
    %213 = vperm.xlu0 %212, %v47
    %v214 = vpop.permute.xlu0 %213
    %v216 = vadd.f32 %v210, %v214
    %v217 = vlog2.pop %v208
    %v218 = vmul.f32 %v217, 0.6931472
    %v219 = vadd.f32 %v216, %v218
    %vm220 = vcmp.gt.f32.partialorder %v50, 0.0
    %v221 = vsel %vm220, 1, 0
    %v222 = vperm.slane %v221, 0
    %vm223 = vcmp.eq.s32.totalorder %v222, 1
    %v224 = vsel %vm223, %v219, %v48
    %s225 = scalar_lea.vmem [#allocation3], 8
    %v226 = vld [vmem:[%s225] sm:$0xff]
    %s227 = scalar_lea.vmem %s1, 1
    %v228 = vld [vmem:[%s227] sm:$0x1]
    %v229 = vrot.slane %v224, 4
    %v230 = vmax.f32 %v224, %v229
    %v231 = vrot.slane %v230, 2
    %v232 = vmax.f32 %v230, %v231
    %v233 = vrot.slane %v232, 1
    %v234 = vmax.f32 %v232, %v233
    %v235 = vsub.f32 %v224, %v234
    %v236 = vmul.f32 %v235, 1.442695
    %v237 = vpow.pop %v236
    %238 = vmatpush.msra.mxu0 0.0
    %239 = vmatpush.msra.mxu0 0.0
    %240 = vmatpush.msra.mxu0 0.0
    %241 = vmatpush.msra.mxu0 0.0
    %242 = vmatpush.msra.mxu0 0.0
    %243 = vmatpush.msra.mxu0 0.0
    %244 = vmatpush.msra.mxu0 0.0
    %245 = vmatpush.msra.mxu0 0.0
    %246 = vmatpush.msra.mxu0 0.0
    %247 = vmatpush.msra.mxu0 0.0
    %248 = vmatpush.msra.mxu0 0.0
    %249 = vmatpush.msra.mxu0 0.0
    %250 = vmatpush.msra.mxu0 0.0
    %251 = vmatpush.msra.mxu0 0.0
    %252 = vmatpush.msra.mxu0 0.0
    %v253 = vand.u32 %v237, 4294901760
    %254 = vmatpush.msra.mxu0 %v253
    %v255 = vand.u32 %v62, 4294901760
    %v256 = vsub.f32 %v62, %v255
    %v257 = vand.u32 %v256, 4294901760
    %v258 = vsub.f32 %v256, %v257
    %v259 = vand.u32 %v258, 4294901760
    %260 = vmatmul.f32.gmra.mxu0 %v259
    %v261 = vpop.f32.mrf.mxu0
    %v262 = vadd.f32 0.0, %v261
    %263 = vdwg.mxu0
    %264 = vmatpush.msra.mxu0 0.0
    %265 = vmatpush.msra.mxu0 0.0
    %266 = vmatpush.msra.mxu0 0.0
    %267 = vmatpush.msra.mxu0 0.0
    %268 = vmatpush.msra.mxu0 0.0
    %269 = vmatpush.msra.mxu0 0.0
    %270 = vmatpush.msra.mxu0 0.0
    %271 = vmatpush.msra.mxu0 0.0
    %272 = vmatpush.msra.mxu0 0.0
    %273 = vmatpush.msra.mxu0 0.0
    %274 = vmatpush.msra.mxu0 0.0
    %275 = vmatpush.msra.mxu0 0.0
    %276 = vmatpush.msra.mxu0 0.0
    %277 = vmatpush.msra.mxu0 0.0
    %278 = vmatpush.msra.mxu0 0.0
    %v279 = vand.u32 %v237, 4294901760
    %v280 = vsub.f32 %v237, %v279
    %v281 = vand.u32 %v280, 4294901760
    %v282 = vsub.f32 %v280, %v281
    %v283 = vand.u32 %v282, 4294901760
    %284 = vmatpush.msra.mxu0 %v283
    %v285 = vand.u32 %v62, 4294901760
    %286 = vmatmul.f32.gmra.mxu0 %v285
    %v287 = vpop.f32.mrf.mxu0
    %v288 = vadd.f32 %v262, %v287
    %289 = vdwg.mxu0
    %290 = vmatpush.msra.mxu0 0.0
    %291 = vmatpush.msra.mxu0 0.0
    %292 = vmatpush.msra.mxu0 0.0
    %293 = vmatpush.msra.mxu0 0.0
    %294 = vmatpush.msra.mxu0 0.0
    %295 = vmatpush.msra.mxu0 0.0
    %296 = vmatpush.msra.mxu0 0.0
    %297 = vmatpush.msra.mxu0 0.0
    %298 = vmatpush.msra.mxu0 0.0
    %299 = vmatpush.msra.mxu0 0.0
    %300 = vmatpush.msra.mxu0 0.0
    %301 = vmatpush.msra.mxu0 0.0
    %302 = vmatpush.msra.mxu0 0.0
    %303 = vmatpush.msra.mxu0 0.0
    %304 = vmatpush.msra.mxu0 0.0
    %v305 = vand.u32 %v237, 4294901760
    %v306 = vsub.f32 %v237, %v305
    %307 = vmatpush.msra.mxu0 %v306
    %v308 = vand.u32 %v62, 4294901760
    %v309 = vsub.f32 %v62, %v308
    %310 = vmatmul.f32.gmra.mxu0 %v309
    %v311 = vpop.f32.mrf.mxu0
    %v312 = vadd.f32 %v288, %v311
    %313 = vdwg.mxu0
    %314 = vmatpush.msra.mxu0 0.0
    %315 = vmatpush.msra.mxu0 0.0
    %316 = vmatpush.msra.mxu0 0.0
    %317 = vmatpush.msra.mxu0 0.0
    %318 = vmatpush.msra.mxu0 0.0
    %319 = vmatpush.msra.mxu0 0.0
    %320 = vmatpush.msra.mxu0 0.0
    %321 = vmatpush.msra.mxu0 0.0
    %322 = vmatpush.msra.mxu0 0.0
    %323 = vmatpush.msra.mxu0 0.0
    %324 = vmatpush.msra.mxu0 0.0
    %325 = vmatpush.msra.mxu0 0.0
    %326 = vmatpush.msra.mxu0 0.0
    %327 = vmatpush.msra.mxu0 0.0
    %328 = vmatpush.msra.mxu0 0.0
    %v329 = vand.u32 %v237, 4294901760
    %330 = vmatpush.msra.mxu0 %v329
    %v331 = vand.u32 %v62, 4294901760
    %v332 = vsub.f32 %v62, %v331
    %v333 = vand.u32 %v332, 4294901760
    %334 = vmatmul.f32.gmra.mxu0 %v333
    %v335 = vpop.f32.mrf.mxu0
    %v336 = vadd.f32 %v312, %v335
    %337 = vdwg.mxu0
    %338 = vmatpush.msra.mxu0 0.0
    %339 = vmatpush.msra.mxu0 0.0
    %340 = vmatpush.msra.mxu0 0.0
    %341 = vmatpush.msra.mxu0 0.0
    %342 = vmatpush.msra.mxu0 0.0
    %343 = vmatpush.msra.mxu0 0.0
    %344 = vmatpush.msra.mxu0 0.0
    %345 = vmatpush.msra.mxu0 0.0
    %346 = vmatpush.msra.mxu0 0.0
    %347 = vmatpush.msra.mxu0 0.0
    %348 = vmatpush.msra.mxu0 0.0
    %349 = vmatpush.msra.mxu0 0.0
    %350 = vmatpush.msra.mxu0 0.0
    %351 = vmatpush.msra.mxu0 0.0
    %352 = vmatpush.msra.mxu0 0.0
    %v353 = vand.u32 %v237, 4294901760
    %v354 = vsub.f32 %v237, %v353
    %v355 = vand.u32 %v354, 4294901760
    %356 = vmatpush.msra.mxu0 %v355
    %v357 = vand.u32 %v62, 4294901760
    %358 = vmatmul.f32.gmra.mxu0 %v357
    %v359 = vpop.f32.mrf.mxu0
    %v360 = vadd.f32 %v336, %v359
    %361 = vdwg.mxu0
    %362 = vmatpush.msra.mxu0 0.0
    %363 = vmatpush.msra.mxu0 0.0
    %364 = vmatpush.msra.mxu0 0.0
    %365 = vmatpush.msra.mxu0 0.0
    %366 = vmatpush.msra.mxu0 0.0
    %367 = vmatpush.msra.mxu0 0.0
    %368 = vmatpush.msra.mxu0 0.0
    %369 = vmatpush.msra.mxu0 0.0
    %370 = vmatpush.msra.mxu0 0.0
    %371 = vmatpush.msra.mxu0 0.0
    %372 = vmatpush.msra.mxu0 0.0
    %373 = vmatpush.msra.mxu0 0.0
    %374 = vmatpush.msra.mxu0 0.0
    %375 = vmatpush.msra.mxu0 0.0
    %376 = vmatpush.msra.mxu0 0.0
    %v377 = vand.u32 %v237, 4294901760
    %378 = vmatpush.msra.mxu0 %v377
    %v379 = vand.u32 %v62, 4294901760
    %380 = vmatmul.f32.gmra.mxu0 %v379
    %v381 = vpop.f32.mrf.mxu0
    %v382 = vadd.f32 %v360, %v381
    %383 = vdwg.mxu0
    %v384 = vadd.f32 %v226, %v234
    %v385 = vadd.f32 %v384, %v214
    %v386 = vlog2.pop %v382
    %v387 = vmul.f32 %v386, 0.6931472
    %v388 = vadd.f32 %v385, %v387
    %vm389 = vcmp.gt.f32.partialorder %v228, 0.0
    %v390 = vsel %vm389, 1, 0
    %v391 = vperm.slane %v390, 0
    %vm392 = vcmp.eq.s32.totalorder %v391, 1
    %v393 = vsel %vm392, %v388, %v224
    %s394 = scalar_lea.vmem [#allocation3], 16
    %v395 = vld [vmem:[%s394] sm:$0xff]
    %s396 = scalar_lea.vmem %s1, 2
    %v397 = vld [vmem:[%s396] sm:$0x1]
    %v398 = vrot.slane %v393, 4
    %v399 = vmax.f32 %v393, %v398
    %v400 = vrot.slane %v399, 2
    %v401 = vmax.f32 %v399, %v400
    %v402 = vrot.slane %v401, 1
    %v403 = vmax.f32 %v401, %v402
    %v404 = vsub.f32 %v393, %v403
    %v405 = vmul.f32 %v404, 1.442695
    %v406 = vpow.pop %v405
    %407 = vmatpush.msra.mxu0 0.0
    %408 = vmatpush.msra.mxu0 0.0
    %409 = vmatpush.msra.mxu0 0.0
    %410 = vmatpush.msra.mxu0 0.0
    %411 = vmatpush.msra.mxu0 0.0
    %412 = vmatpush.msra.mxu0 0.0
    %413 = vmatpush.msra.mxu0 0.0
    %414 = vmatpush.msra.mxu0 0.0
    %415 = vmatpush.msra.mxu0 0.0
    %416 = vmatpush.msra.mxu0 0.0
    %417 = vmatpush.msra.mxu0 0.0
    %418 = vmatpush.msra.mxu0 0.0
    %419 = vmatpush.msra.mxu0 0.0
    %420 = vmatpush.msra.mxu0 0.0
    %421 = vmatpush.msra.mxu0 0.0
    %v422 = vand.u32 %v406, 4294901760
    %423 = vmatpush.msra.mxu0 %v422
    %v424 = vand.u32 %v62, 4294901760
    %v425 = vsub.f32 %v62, %v424
    %v426 = vand.u32 %v425, 4294901760
    %v427 = vsub.f32 %v425, %v426
    %v428 = vand.u32 %v427, 4294901760
    %429 = vmatmul.f32.gmra.mxu0 %v428
    %v430 = vpop.f32.mrf.mxu0
    %v431 = vadd.f32 0.0, %v430
    %432 = vdwg.mxu0
    %433 = vmatpush.msra.mxu0 0.0
    %434 = vmatpush.msra.mxu0 0.0
    %435 = vmatpush.msra.mxu0 0.0
    %436 = vmatpush.msra.mxu0 0.0
    %437 = vmatpush.msra.mxu0 0.0
    %438 = vmatpush.msra.mxu0 0.0
    %439 = vmatpush.msra.mxu0 0.0
    %440 = vmatpush.msra.mxu0 0.0
    %441 = vmatpush.msra.mxu0 0.0
    %442 = vmatpush.msra.mxu0 0.0
    %443 = vmatpush.msra.mxu0 0.0
    %444 = vmatpush.msra.mxu0 0.0
    %445 = vmatpush.msra.mxu0 0.0
    %446 = vmatpush.msra.mxu0 0.0
    %447 = vmatpush.msra.mxu0 0.0
    %v448 = vand.u32 %v406, 4294901760
    %v449 = vsub.f32 %v406, %v448
    %v450 = vand.u32 %v449, 4294901760
    %v451 = vsub.f32 %v449, %v450
    %v452 = vand.u32 %v451, 4294901760
    %453 = vmatpush.msra.mxu0 %v452
    %v454 = vand.u32 %v62, 4294901760
    %455 = vmatmul.f32.gmra.mxu0 %v454
    %v456 = vpop.f32.mrf.mxu0
    %v457 = vadd.f32 %v431, %v456
    %458 = vdwg.mxu0
    %459 = vmatpush.msra.mxu0 0.0
    %460 = vmatpush.msra.mxu0 0.0
    %461 = vmatpush.msra.mxu0 0.0
    %462 = vmatpush.msra.mxu0 0.0
    %463 = vmatpush.msra.mxu0 0.0
    %464 = vmatpush.msra.mxu0 0.0
    %465 = vmatpush.msra.mxu0 0.0
    %466 = vmatpush.msra.mxu0 0.0
    %467 = vmatpush.msra.mxu0 0.0
    %468 = vmatpush.msra.mxu0 0.0
    %469 = vmatpush.msra.mxu0 0.0
    %470 = vmatpush.msra.mxu0 0.0
    %471 = vmatpush.msra.mxu0 0.0
    %472 = vmatpush.msra.mxu0 0.0
    %473 = vmatpush.msra.mxu0 0.0
    %v474 = vand.u32 %v406, 4294901760
    %v475 = vsub.f32 %v406, %v474
    %476 = vmatpush.msra.mxu0 %v475
    %v477 = vand.u32 %v62, 4294901760
    %v478 = vsub.f32 %v62, %v477
    %479 = vmatmul.f32.gmra.mxu0 %v478
    %v480 = vpop.f32.mrf.mxu0
    %v481 = vadd.f32 %v457, %v480
    %482 = vdwg.mxu0
    %483 = vmatpush.msra.mxu0 0.0
    %484 = vmatpush.msra.mxu0 0.0
    %485 = vmatpush.msra.mxu0 0.0
    %486 = vmatpush.msra.mxu0 0.0
    %487 = vmatpush.msra.mxu0 0.0
    %488 = vmatpush.msra.mxu0 0.0
    %489 = vmatpush.msra.mxu0 0.0
    %490 = vmatpush.msra.mxu0 0.0
    %491 = vmatpush.msra.mxu0 0.0
    %492 = vmatpush.msra.mxu0 0.0
    %493 = vmatpush.msra.mxu0 0.0
    %494 = vmatpush.msra.mxu0 0.0
    %495 = vmatpush.msra.mxu0 0.0
    %496 = vmatpush.msra.mxu0 0.0
    %497 = vmatpush.msra.mxu0 0.0
    %v498 = vand.u32 %v406, 4294901760
    %499 = vmatpush.msra.mxu0 %v498
    %v500 = vand.u32 %v62, 4294901760
    %v501 = vsub.f32 %v62, %v500
    %v502 = vand.u32 %v501, 4294901760
    %503 = vmatmul.f32.gmra.mxu0 %v502
    %v504 = vpop.f32.mrf.mxu0
    %v505 = vadd.f32 %v481, %v504
    %506 = vdwg.mxu0
    %507 = vmatpush.msra.mxu0 0.0
    %508 = vmatpush.msra.mxu0 0.0
    %509 = vmatpush.msra.mxu0 0.0
    %510 = vmatpush.msra.mxu0 0.0
    %511 = vmatpush.msra.mxu0 0.0
    %512 = vmatpush.msra.mxu0 0.0
    %513 = vmatpush.msra.mxu0 0.0
    %514 = vmatpush.msra.mxu0 0.0
    %515 = vmatpush.msra.mxu0 0.0
    %516 = vmatpush.msra.mxu0 0.0
    %517 = vmatpush.msra.mxu0 0.0
    %518 = vmatpush.msra.mxu0 0.0
    %519 = vmatpush.msra.mxu0 0.0
    %520 = vmatpush.msra.mxu0 0.0
    %521 = vmatpush.msra.mxu0 0.0
    %v522 = vand.u32 %v406, 4294901760
    %v523 = vsub.f32 %v406, %v522
    %v524 = vand.u32 %v523, 4294901760
    %525 = vmatpush.msra.mxu0 %v524
    %v526 = vand.u32 %v62, 4294901760
    %527 = vmatmul.f32.gmra.mxu0 %v526
    %v528 = vpop.f32.mrf.mxu0
    %v529 = vadd.f32 %v505, %v528
    %530 = vdwg.mxu0
    %531 = vmatpush.msra.mxu0 0.0
    %532 = vmatpush.msra.mxu0 0.0
    %533 = vmatpush.msra.mxu0 0.0
    %534 = vmatpush.msra.mxu0 0.0
    %535 = vmatpush.msra.mxu0 0.0
    %536 = vmatpush.msra.mxu0 0.0
    %537 = vmatpush.msra.mxu0 0.0
    %538 = vmatpush.msra.mxu0 0.0
    %539 = vmatpush.msra.mxu0 0.0
    %540 = vmatpush.msra.mxu0 0.0
    %541 = vmatpush.msra.mxu0 0.0
    %542 = vmatpush.msra.mxu0 0.0
    %543 = vmatpush.msra.mxu0 0.0
    %544 = vmatpush.msra.mxu0 0.0
    %545 = vmatpush.msra.mxu0 0.0
    %v546 = vand.u32 %v406, 4294901760
    %547 = vmatpush.msra.mxu0 %v546
    %v548 = vand.u32 %v62, 4294901760
    %549 = vmatmul.f32.gmra.mxu0 %v548
    %v550 = vpop.f32.mrf.mxu0
    %v551 = vadd.f32 %v529, %v550
    %552 = vdwg.mxu0
    %v553 = vadd.f32 %v395, %v403
    %v554 = vadd.f32 %v553, %v214
    %v555 = vlog2.pop %v551
    %v556 = vmul.f32 %v555, 0.6931472
    %v557 = vadd.f32 %v554, %v556
    %vm558 = vcmp.gt.f32.partialorder %v397, 0.0
    %v559 = vsel %vm558, 1, 0
    %v560 = vperm.slane %v559, 0
    %vm561 = vcmp.eq.s32.totalorder %v560, 1
    %v562 = vsel %vm561, %v557, %v393
    %s563 = scalar_lea.vmem [#allocation3], 24
    %v564 = vld [vmem:[%s563] sm:$0xff]
    %s565 = scalar_lea.vmem %s1, 3
    %v566 = vld [vmem:[%s565] sm:$0x1]
    %v567 = vrot.slane %v562, 4
    %v568 = vmax.f32 %v562, %v567
    %v569 = vrot.slane %v568, 2
    %v570 = vmax.f32 %v568, %v569
    %v571 = vrot.slane %v570, 1
    %v572 = vmax.f32 %v570, %v571
    %v573 = vsub.f32 %v562, %v572
    %v574 = vmul.f32 %v573, 1.442695
    %v575 = vpow.pop %v574
    %576 = vmatpush.msra.mxu0 0.0
    %577 = vmatpush.msra.mxu0 0.0
    %578 = vmatpush.msra.mxu0 0.0
    %579 = vmatpush.msra.mxu0 0.0
    %580 = vmatpush.msra.mxu0 0.0
    %581 = vmatpush.msra.mxu0 0.0
    %582 = vmatpush.msra.mxu0 0.0
    %583 = vmatpush.msra.mxu0 0.0
    %584 = vmatpush.msra.mxu0 0.0
    %585 = vmatpush.msra.mxu0 0.0
    %586 = vmatpush.msra.mxu0 0.0
    %587 = vmatpush.msra.mxu0 0.0
    %588 = vmatpush.msra.mxu0 0.0
    %589 = vmatpush.msra.mxu0 0.0
    %590 = vmatpush.msra.mxu0 0.0
    %v591 = vand.u32 %v575, 4294901760
    %592 = vmatpush.msra.mxu0 %v591
    %v593 = vand.u32 %v62, 4294901760
    %v594 = vsub.f32 %v62, %v593
    %v595 = vand.u32 %v594, 4294901760
    %v596 = vsub.f32 %v594, %v595
    %v597 = vand.u32 %v596, 4294901760
    %598 = vmatmul.f32.gmra.mxu0 %v597
    %v599 = vpop.f32.mrf.mxu0
    %v600 = vadd.f32 0.0, %v599
    %601 = vdwg.mxu0
    %602 = vmatpush.msra.mxu0 0.0
    %603 = vmatpush.msra.mxu0 0.0
    %604 = vmatpush.msra.mxu0 0.0
    %605 = vmatpush.msra.mxu0 0.0
    %606 = vmatpush.msra.mxu0 0.0
    %607 = vmatpush.msra.mxu0 0.0
    %608 = vmatpush.msra.mxu0 0.0
    %609 = vmatpush.msra.mxu0 0.0
    %610 = vmatpush.msra.mxu0 0.0
    %611 = vmatpush.msra.mxu0 0.0
    %612 = vmatpush.msra.mxu0 0.0
    %613 = vmatpush.msra.mxu0 0.0
    %614 = vmatpush.msra.mxu0 0.0
    %615 = vmatpush.msra.mxu0 0.0
    %616 = vmatpush.msra.mxu0 0.0
    %v617 = vand.u32 %v575, 4294901760
    %v618 = vsub.f32 %v575, %v617
    %v619 = vand.u32 %v618, 4294901760
    %v620 = vsub.f32 %v618, %v619
    %v621 = vand.u32 %v620, 4294901760
    %622 = vmatpush.msra.mxu0 %v621
    %v623 = vand.u32 %v62, 4294901760
    %624 = vmatmul.f32.gmra.mxu0 %v623
    %v625 = vpop.f32.mrf.mxu0
    %v626 = vadd.f32 %v600, %v625
    %627 = vdwg.mxu0
    %628 = vmatpush.msra.mxu0 0.0
    %629 = vmatpush.msra.mxu0 0.0
    %630 = vmatpush.msra.mxu0 0.0
    %631 = vmatpush.msra.mxu0 0.0
    %632 = vmatpush.msra.mxu0 0.0
    %633 = vmatpush.msra.mxu0 0.0
    %634 = vmatpush.msra.mxu0 0.0
    %635 = vmatpush.msra.mxu0 0.0
    %636 = vmatpush.msra.mxu0 0.0
    %637 = vmatpush.msra.mxu0 0.0
    %638 = vmatpush.msra.mxu0 0.0
    %639 = vmatpush.msra.mxu0 0.0
    %640 = vmatpush.msra.mxu0 0.0
    %641 = vmatpush.msra.mxu0 0.0
    %642 = vmatpush.msra.mxu0 0.0
    %v643 = vand.u32 %v575, 4294901760
    %v644 = vsub.f32 %v575, %v643
    %645 = vmatpush.msra.mxu0 %v644
    %v646 = vand.u32 %v62, 4294901760
    %v647 = vsub.f32 %v62, %v646
    %648 = vmatmul.f32.gmra.mxu0 %v647
    %v649 = vpop.f32.mrf.mxu0
    %v650 = vadd.f32 %v626, %v649
    %651 = vdwg.mxu0
    %652 = vmatpush.msra.mxu0 0.0
    %653 = vmatpush.msra.mxu0 0.0
    %654 = vmatpush.msra.mxu0 0.0
    %655 = vmatpush.msra.mxu0 0.0
    %656 = vmatpush.msra.mxu0 0.0
    %657 = vmatpush.msra.mxu0 0.0
    %658 = vmatpush.msra.mxu0 0.0
    %659 = vmatpush.msra.mxu0 0.0
    %660 = vmatpush.msra.mxu0 0.0
    %661 = vmatpush.msra.mxu0 0.0
    %662 = vmatpush.msra.mxu0 0.0
    %663 = vmatpush.msra.mxu0 0.0
    %664 = vmatpush.msra.mxu0 0.0
    %665 = vmatpush.msra.mxu0 0.0
    %666 = vmatpush.msra.mxu0 0.0
    %v667 = vand.u32 %v575, 4294901760
    %668 = vmatpush.msra.mxu0 %v667
    %v669 = vand.u32 %v62, 4294901760
    %v670 = vsub.f32 %v62, %v669
    %v671 = vand.u32 %v670, 4294901760
    %672 = vmatmul.f32.gmra.mxu0 %v671
    %v673 = vpop.f32.mrf.mxu0
    %v674 = vadd.f32 %v650, %v673
    %675 = vdwg.mxu0
    %676 = vmatpush.msra.mxu0 0.0
    %677 = vmatpush.msra.mxu0 0.0
    %678 = vmatpush.msra.mxu0 0.0
    %679 = vmatpush.msra.mxu0 0.0
    %680 = vmatpush.msra.mxu0 0.0
    %681 = vmatpush.msra.mxu0 0.0
    %682 = vmatpush.msra.mxu0 0.0
    %683 = vmatpush.msra.mxu0 0.0
    %684 = vmatpush.msra.mxu0 0.0
    %685 = vmatpush.msra.mxu0 0.0
    %686 = vmatpush.msra.mxu0 0.0
    %687 = vmatpush.msra.mxu0 0.0
    %688 = vmatpush.msra.mxu0 0.0
    %689 = vmatpush.msra.mxu0 0.0
    %690 = vmatpush.msra.mxu0 0.0
    %v691 = vand.u32 %v575, 4294901760
    %v692 = vsub.f32 %v575, %v691
    %v693 = vand.u32 %v692, 4294901760
    %694 = vmatpush.msra.mxu0 %v693
    %v695 = vand.u32 %v62, 4294901760
    %696 = vmatmul.f32.gmra.mxu0 %v695
    %v697 = vpop.f32.mrf.mxu0
    %v698 = vadd.f32 %v674, %v697
    %699 = vdwg.mxu0
    %700 = vmatpush.msra.mxu0 0.0
    %701 = vmatpush.msra.mxu0 0.0
    %702 = vmatpush.msra.mxu0 0.0
    %703 = vmatpush.msra.mxu0 0.0
    %704 = vmatpush.msra.mxu0 0.0
    %705 = vmatpush.msra.mxu0 0.0
    %706 = vmatpush.msra.mxu0 0.0
    %707 = vmatpush.msra.mxu0 0.0
    %708 = vmatpush.msra.mxu0 0.0
    %709 = vmatpush.msra.mxu0 0.0
    %710 = vmatpush.msra.mxu0 0.0
    %711 = vmatpush.msra.mxu0 0.0
    %712 = vmatpush.msra.mxu0 0.0
    %713 = vmatpush.msra.mxu0 0.0
    %714 = vmatpush.msra.mxu0 0.0
    %v715 = vand.u32 %v575, 4294901760
    %716 = vmatpush.msra.mxu0 %v715
    %v717 = vand.u32 %v62, 4294901760
    %718 = vmatmul.f32.gmra.mxu0 %v717
    %v719 = vpop.f32.mrf.mxu0
    %v720 = vadd.f32 %v698, %v719
    %721 = vdwg.mxu0
    %v722 = vadd.f32 %v564, %v572
    %v723 = vadd.f32 %v722, %v214
    %v724 = vlog2.pop %v720
    %v725 = vmul.f32 %v724, 0.6931472
    %v726 = vadd.f32 %v723, %v725
    %vm727 = vcmp.gt.f32.partialorder %v566, 0.0
    %v728 = vsel %vm727, 1, 0
    %v729 = vperm.slane %v728, 0
    %vm730 = vcmp.eq.s32.totalorder %v729, 1
    %v731 = vsel %vm730, %v726, %v562
    %s732 = scalar_lea.vmem [#allocation3], 32
    %v733 = vld [vmem:[%s732] sm:$0xff]
    %s734 = scalar_lea.vmem %s1, 4
    %v735 = vld [vmem:[%s734] sm:$0x1]
    %v736 = vrot.slane %v731, 4
    %v737 = vmax.f32 %v731, %v736
    %v738 = vrot.slane %v737, 2
    %v739 = vmax.f32 %v737, %v738
    %v740 = vrot.slane %v739, 1
    %v741 = vmax.f32 %v739, %v740
    %v742 = vsub.f32 %v731, %v741
    %v743 = vmul.f32 %v742, 1.442695
    %v744 = vpow.pop %v743
    %745 = vmatpush.msra.mxu0 0.0
    %746 = vmatpush.msra.mxu0 0.0
    %747 = vmatpush.msra.mxu0 0.0
    %748 = vmatpush.msra.mxu0 0.0
    %749 = vmatpush.msra.mxu0 0.0
    %750 = vmatpush.msra.mxu0 0.0
    %751 = vmatpush.msra.mxu0 0.0
    %752 = vmatpush.msra.mxu0 0.0
    %753 = vmatpush.msra.mxu0 0.0
    %754 = vmatpush.msra.mxu0 0.0
    %755 = vmatpush.msra.mxu0 0.0
    %756 = vmatpush.msra.mxu0 0.0
    %757 = vmatpush.msra.mxu0 0.0
    %758 = vmatpush.msra.mxu0 0.0
    %759 = vmatpush.msra.mxu0 0.0
    %v760 = vand.u32 %v744, 4294901760
    %761 = vmatpush.msra.mxu0 %v760
    %v762 = vand.u32 %v62, 4294901760
    %v763 = vsub.f32 %v62, %v762
    %v764 = vand.u32 %v763, 4294901760
    %v765 = vsub.f32 %v763, %v764
    %v766 = vand.u32 %v765, 4294901760
    %767 = vmatmul.f32.gmra.mxu0 %v766
    %v768 = vpop.f32.mrf.mxu0
    %v769 = vadd.f32 0.0, %v768
    %770 = vdwg.mxu0
    %771 = vmatpush.msra.mxu0 0.0
    %772 = vmatpush.msra.mxu0 0.0
    %773 = vmatpush.msra.mxu0 0.0
    %774 = vmatpush.msra.mxu0 0.0
    %775 = vmatpush.msra.mxu0 0.0
    %776 = vmatpush.msra.mxu0 0.0
    %777 = vmatpush.msra.mxu0 0.0
    %778 = vmatpush.msra.mxu0 0.0
    %779 = vmatpush.msra.mxu0 0.0
    %780 = vmatpush.msra.mxu0 0.0
    %781 = vmatpush.msra.mxu0 0.0
    %782 = vmatpush.msra.mxu0 0.0
    %783 = vmatpush.msra.mxu0 0.0
    %784 = vmatpush.msra.mxu0 0.0
    %785 = vmatpush.msra.mxu0 0.0
    %v786 = vand.u32 %v744, 4294901760
    %v787 = vsub.f32 %v744, %v786
    %v788 = vand.u32 %v787, 4294901760
    %v789 = vsub.f32 %v787, %v788
    %v790 = vand.u32 %v789, 4294901760
    %791 = vmatpush.msra.mxu0 %v790
    %v792 = vand.u32 %v62, 4294901760
    %793 = vmatmul.f32.gmra.mxu0 %v792
    %v794 = vpop.f32.mrf.mxu0
    %v795 = vadd.f32 %v769, %v794
    %796 = vdwg.mxu0
    %797 = vmatpush.msra.mxu0 0.0
    %798 = vmatpush.msra.mxu0 0.0
    %799 = vmatpush.msra.mxu0 0.0
    %800 = vmatpush.msra.mxu0 0.0
    %801 = vmatpush.msra.mxu0 0.0
    %802 = vmatpush.msra.mxu0 0.0
    %803 = vmatpush.msra.mxu0 0.0
    %804 = vmatpush.msra.mxu0 0.0
    %805 = vmatpush.msra.mxu0 0.0
    %806 = vmatpush.msra.mxu0 0.0
    %807 = vmatpush.msra.mxu0 0.0
    %808 = vmatpush.msra.mxu0 0.0
    %809 = vmatpush.msra.mxu0 0.0
    %810 = vmatpush.msra.mxu0 0.0
    %811 = vmatpush.msra.mxu0 0.0
    %v812 = vand.u32 %v744, 4294901760
    %v813 = vsub.f32 %v744, %v812
    %814 = vmatpush.msra.mxu0 %v813
    %v815 = vand.u32 %v62, 4294901760
    %v816 = vsub.f32 %v62, %v815
    %817 = vmatmul.f32.gmra.mxu0 %v816
    %v818 = vpop.f32.mrf.mxu0
    %v819 = vadd.f32 %v795, %v818
    %820 = vdwg.mxu0
    %821 = vmatpush.msra.mxu0 0.0
    %822 = vmatpush.msra.mxu0 0.0
    %823 = vmatpush.msra.mxu0 0.0
    %824 = vmatpush.msra.mxu0 0.0
    %825 = vmatpush.msra.mxu0 0.0
    %826 = vmatpush.msra.mxu0 0.0
    %827 = vmatpush.msra.mxu0 0.0
    %828 = vmatpush.msra.mxu0 0.0
    %829 = vmatpush.msra.mxu0 0.0
    %830 = vmatpush.msra.mxu0 0.0
    %831 = vmatpush.msra.mxu0 0.0
    %832 = vmatpush.msra.mxu0 0.0
    %833 = vmatpush.msra.mxu0 0.0
    %834 = vmatpush.msra.mxu0 0.0
    %835 = vmatpush.msra.mxu0 0.0
    %v836 = vand.u32 %v744, 4294901760
    %837 = vmatpush.msra.mxu0 %v836
    %v838 = vand.u32 %v62, 4294901760
    %v839 = vsub.f32 %v62, %v838
    %v840 = vand.u32 %v839, 4294901760
    %841 = vmatmul.f32.gmra.mxu0 %v840
    %v842 = vpop.f32.mrf.mxu0
    %v843 = vadd.f32 %v819, %v842
    %844 = vdwg.mxu0
    %845 = vmatpush.msra.mxu0 0.0
    %846 = vmatpush.msra.mxu0 0.0
    %847 = vmatpush.msra.mxu0 0.0
    %848 = vmatpush.msra.mxu0 0.0
    %849 = vmatpush.msra.mxu0 0.0
    %850 = vmatpush.msra.mxu0 0.0
    %851 = vmatpush.msra.mxu0 0.0
    %852 = vmatpush.msra.mxu0 0.0
    %853 = vmatpush.msra.mxu0 0.0
    %854 = vmatpush.msra.mxu0 0.0
    %855 = vmatpush.msra.mxu0 0.0
    %856 = vmatpush.msra.mxu0 0.0
    %857 = vmatpush.msra.mxu0 0.0
    %858 = vmatpush.msra.mxu0 0.0
    %859 = vmatpush.msra.mxu0 0.0
    %v860 = vand.u32 %v744, 4294901760
    %v861 = vsub.f32 %v744, %v860
    %v862 = vand.u32 %v861, 4294901760
    %863 = vmatpush.msra.mxu0 %v862
    %v864 = vand.u32 %v62, 4294901760
    %865 = vmatmul.f32.gmra.mxu0 %v864
    %v866 = vpop.f32.mrf.mxu0
    %v867 = vadd.f32 %v843, %v866
    %868 = vdwg.mxu0
    %869 = vmatpush.msra.mxu0 0.0
    %870 = vmatpush.msra.mxu0 0.0
    %871 = vmatpush.msra.mxu0 0.0
    %872 = vmatpush.msra.mxu0 0.0
    %873 = vmatpush.msra.mxu0 0.0
    %874 = vmatpush.msra.mxu0 0.0
    %875 = vmatpush.msra.mxu0 0.0
    %876 = vmatpush.msra.mxu0 0.0
    %877 = vmatpush.msra.mxu0 0.0
    %878 = vmatpush.msra.mxu0 0.0
    %879 = vmatpush.msra.mxu0 0.0
    %880 = vmatpush.msra.mxu0 0.0
    %881 = vmatpush.msra.mxu0 0.0
    %882 = vmatpush.msra.mxu0 0.0
    %883 = vmatpush.msra.mxu0 0.0
    %v884 = vand.u32 %v744, 4294901760
    %885 = vmatpush.msra.mxu0 %v884
    %v886 = vand.u32 %v62, 4294901760
    %887 = vmatmul.f32.gmra.mxu0 %v886
    %v888 = vpop.f32.mrf.mxu0
    %v889 = vadd.f32 %v867, %v888
    %890 = vdwg.mxu0
    %v891 = vadd.f32 %v733, %v741
    %v892 = vadd.f32 %v891, %v214
    %v893 = vlog2.pop %v889
    %v894 = vmul.f32 %v893, 0.6931472
    %v895 = vadd.f32 %v892, %v894
    %vm896 = vcmp.gt.f32.partialorder %v735, 0.0
    %v897 = vsel %vm896, 1, 0
    %v898 = vperm.slane %v897, 0
    %vm899 = vcmp.eq.s32.totalorder %v898, 1
    %v900 = vsel %vm899, %v895, %v731
    %s901 = scalar_lea.vmem [#allocation3], 40
    %v902 = vld [vmem:[%s901] sm:$0xff]
    %s903 = scalar_lea.vmem %s1, 5
    %v904 = vld [vmem:[%s903] sm:$0x1]
    %v905 = vrot.slane %v900, 4
    %v906 = vmax.f32 %v900, %v905
    %v907 = vrot.slane %v906, 2
    %v908 = vmax.f32 %v906, %v907
    %v909 = vrot.slane %v908, 1
    %v910 = vmax.f32 %v908, %v909
    %v911 = vsub.f32 %v900, %v910
    %v912 = vmul.f32 %v911, 1.442695
    %v913 = vpow.pop %v912
    %914 = vmatpush.msra.mxu0 0.0
    %915 = vmatpush.msra.mxu0 0.0
    %916 = vmatpush.msra.mxu0 0.0
    %917 = vmatpush.msra.mxu0 0.0
    %918 = vmatpush.msra.mxu0 0.0
    %919 = vmatpush.msra.mxu0 0.0
    %920 = vmatpush.msra.mxu0 0.0
    %921 = vmatpush.msra.mxu0 0.0
    %922 = vmatpush.msra.mxu0 0.0
    %923 = vmatpush.msra.mxu0 0.0
    %924 = vmatpush.msra.mxu0 0.0
    %925 = vmatpush.msra.mxu0 0.0
    %926 = vmatpush.msra.mxu0 0.0
    %927 = vmatpush.msra.mxu0 0.0
    %928 = vmatpush.msra.mxu0 0.0
    %v929 = vand.u32 %v913, 4294901760
    %930 = vmatpush.msra.mxu0 %v929
    %v931 = vand.u32 %v62, 4294901760
    %v932 = vsub.f32 %v62, %v931
    %v933 = vand.u32 %v932, 4294901760
    %v934 = vsub.f32 %v932, %v933
    %v935 = vand.u32 %v934, 4294901760
    %936 = vmatmul.f32.gmra.mxu0 %v935
    %v937 = vpop.f32.mrf.mxu0
    %v938 = vadd.f32 0.0, %v937
    %939 = vdwg.mxu0
    %940 = vmatpush.msra.mxu0 0.0
    %941 = vmatpush.msra.mxu0 0.0
    %942 = vmatpush.msra.mxu0 0.0
    %943 = vmatpush.msra.mxu0 0.0
    %944 = vmatpush.msra.mxu0 0.0
    %945 = vmatpush.msra.mxu0 0.0
    %946 = vmatpush.msra.mxu0 0.0
    %947 = vmatpush.msra.mxu0 0.0
    %948 = vmatpush.msra.mxu0 0.0
    %949 = vmatpush.msra.mxu0 0.0
    %950 = vmatpush.msra.mxu0 0.0
    %951 = vmatpush.msra.mxu0 0.0
    %952 = vmatpush.msra.mxu0 0.0
    %953 = vmatpush.msra.mxu0 0.0
    %954 = vmatpush.msra.mxu0 0.0
    %v955 = vand.u32 %v913, 4294901760
    %v956 = vsub.f32 %v913, %v955
    %v957 = vand.u32 %v956, 4294901760
    %v958 = vsub.f32 %v956, %v957
    %v959 = vand.u32 %v958, 4294901760
    %960 = vmatpush.msra.mxu0 %v959
    %v961 = vand.u32 %v62, 4294901760
    %962 = vmatmul.f32.gmra.mxu0 %v961
    %v963 = vpop.f32.mrf.mxu0
    %v964 = vadd.f32 %v938, %v963
    %965 = vdwg.mxu0
    %966 = vmatpush.msra.mxu0 0.0
    %967 = vmatpush.msra.mxu0 0.0
    %968 = vmatpush.msra.mxu0 0.0
    %969 = vmatpush.msra.mxu0 0.0
    %970 = vmatpush.msra.mxu0 0.0
    %971 = vmatpush.msra.mxu0 0.0
    %972 = vmatpush.msra.mxu0 0.0
    %973 = vmatpush.msra.mxu0 0.0
    %974 = vmatpush.msra.mxu0 0.0
    %975 = vmatpush.msra.mxu0 0.0
    %976 = vmatpush.msra.mxu0 0.0
    %977 = vmatpush.msra.mxu0 0.0
    %978 = vmatpush.msra.mxu0 0.0
    %979 = vmatpush.msra.mxu0 0.0
    %980 = vmatpush.msra.mxu0 0.0
    %v981 = vand.u32 %v913, 4294901760
    %v982 = vsub.f32 %v913, %v981
    %983 = vmatpush.msra.mxu0 %v982
    %v984 = vand.u32 %v62, 4294901760
    %v985 = vsub.f32 %v62, %v984
    %986 = vmatmul.f32.gmra.mxu0 %v985
    %v987 = vpop.f32.mrf.mxu0
    %v988 = vadd.f32 %v964, %v987
    %989 = vdwg.mxu0
    %990 = vmatpush.msra.mxu0 0.0
    %991 = vmatpush.msra.mxu0 0.0
    %992 = vmatpush.msra.mxu0 0.0
    %993 = vmatpush.msra.mxu0 0.0
    %994 = vmatpush.msra.mxu0 0.0
    %995 = vmatpush.msra.mxu0 0.0
    %996 = vmatpush.msra.mxu0 0.0
    %997 = vmatpush.msra.mxu0 0.0
    %998 = vmatpush.msra.mxu0 0.0
    %999 = vmatpush.msra.mxu0 0.0
    %1000 = vmatpush.msra.mxu0 0.0
    %1001 = vmatpush.msra.mxu0 0.0
    %1002 = vmatpush.msra.mxu0 0.0
    %1003 = vmatpush.msra.mxu0 0.0
    %1004 = vmatpush.msra.mxu0 0.0
    %v1005 = vand.u32 %v913, 4294901760
    %1006 = vmatpush.msra.mxu0 %v1005
    %v1007 = vand.u32 %v62, 4294901760
    %v1008 = vsub.f32 %v62, %v1007
    %v1009 = vand.u32 %v1008, 4294901760
    %1010 = vmatmul.f32.gmra.mxu0 %v1009
    %v1011 = vpop.f32.mrf.mxu0
    %v1012 = vadd.f32 %v988, %v1011
    %1013 = vdwg.mxu0
    %1014 = vmatpush.msra.mxu0 0.0
    %1015 = vmatpush.msra.mxu0 0.0
    %1016 = vmatpush.msra.mxu0 0.0
    %1017 = vmatpush.msra.mxu0 0.0
    %1018 = vmatpush.msra.mxu0 0.0
    %1019 = vmatpush.msra.mxu0 0.0
    %1020 = vmatpush.msra.mxu0 0.0
    %1021 = vmatpush.msra.mxu0 0.0
    %1022 = vmatpush.msra.mxu0 0.0
    %1023 = vmatpush.msra.mxu0 0.0
    %1024 = vmatpush.msra.mxu0 0.0
    %1025 = vmatpush.msra.mxu0 0.0
    %1026 = vmatpush.msra.mxu0 0.0
    %1027 = vmatpush.msra.mxu0 0.0
    %1028 = vmatpush.msra.mxu0 0.0
    %v1029 = vand.u32 %v913, 4294901760
    %v1030 = vsub.f32 %v913, %v1029
    %v1031 = vand.u32 %v1030, 4294901760
    %1032 = vmatpush.msra.mxu0 %v1031
    %v1033 = vand.u32 %v62, 4294901760
    %1034 = vmatmul.f32.gmra.mxu0 %v1033
    %v1035 = vpop.f32.mrf.mxu0
    %v1036 = vadd.f32 %v1012, %v1035
    %1037 = vdwg.mxu0
    %1038 = vmatpush.msra.mxu0 0.0
    %1039 = vmatpush.msra.mxu0 0.0
    %1040 = vmatpush.msra.mxu0 0.0
    %1041 = vmatpush.msra.mxu0 0.0
    %1042 = vmatpush.msra.mxu0 0.0
    %1043 = vmatpush.msra.mxu0 0.0
    %1044 = vmatpush.msra.mxu0 0.0
    %1045 = vmatpush.msra.mxu0 0.0
    %1046 = vmatpush.msra.mxu0 0.0
    %1047 = vmatpush.msra.mxu0 0.0
    %1048 = vmatpush.msra.mxu0 0.0
    %1049 = vmatpush.msra.mxu0 0.0
    %1050 = vmatpush.msra.mxu0 0.0
    %1051 = vmatpush.msra.mxu0 0.0
    %1052 = vmatpush.msra.mxu0 0.0
    %v1053 = vand.u32 %v913, 4294901760
    %1054 = vmatpush.msra.mxu0 %v1053
    %v1055 = vand.u32 %v62, 4294901760
    %1056 = vmatmul.f32.gmra.mxu0 %v1055
    %v1057 = vpop.f32.mrf.mxu0
    %v1058 = vadd.f32 %v1036, %v1057
    %1059 = vdwg.mxu0
    %v1060 = vadd.f32 %v902, %v910
    %v1061 = vadd.f32 %v1060, %v214
    %v1062 = vlog2.pop %v1058
    %v1063 = vmul.f32 %v1062, 0.6931472
    %v1064 = vadd.f32 %v1061, %v1063
    %vm1065 = vcmp.gt.f32.partialorder %v904, 0.0
    %v1066 = vsel %vm1065, 1, 0
    %v1067 = vperm.slane %v1066, 0
    %vm1068 = vcmp.eq.s32.totalorder %v1067, 1
    %v1069 = vsel %vm1068, %v1064, %v900
    %s1070 = scalar_lea.vmem [#allocation3], 48
    %v1071 = vld [vmem:[%s1070] sm:$0xff]
    %s1072 = scalar_lea.vmem %s1, 6
    %v1073 = vld [vmem:[%s1072] sm:$0x1]
    %v1074 = vrot.slane %v1069, 4
    %v1075 = vmax.f32 %v1069, %v1074
    %v1076 = vrot.slane %v1075, 2
    %v1077 = vmax.f32 %v1075, %v1076
    %v1078 = vrot.slane %v1077, 1
    %v1079 = vmax.f32 %v1077, %v1078
    %v1080 = vsub.f32 %v1069, %v1079
    %v1081 = vmul.f32 %v1080, 1.442695
    %v1082 = vpow.pop %v1081
    %1083 = vmatpush.msra.mxu0 0.0
    %1084 = vmatpush.msra.mxu0 0.0
    %1085 = vmatpush.msra.mxu0 0.0
    %1086 = vmatpush.msra.mxu0 0.0
    %1087 = vmatpush.msra.mxu0 0.0
    %1088 = vmatpush.msra.mxu0 0.0
    %1089 = vmatpush.msra.mxu0 0.0
    %1090 = vmatpush.msra.mxu0 0.0
    %1091 = vmatpush.msra.mxu0 0.0
    %1092 = vmatpush.msra.mxu0 0.0
    %1093 = vmatpush.msra.mxu0 0.0
    %1094 = vmatpush.msra.mxu0 0.0
    %1095 = vmatpush.msra.mxu0 0.0
    %1096 = vmatpush.msra.mxu0 0.0
    %1097 = vmatpush.msra.mxu0 0.0
    %v1098 = vand.u32 %v1082, 4294901760
    %1099 = vmatpush.msra.mxu0 %v1098
    %v1100 = vand.u32 %v62, 4294901760
    %v1101 = vsub.f32 %v62, %v1100
    %v1102 = vand.u32 %v1101, 4294901760
    %v1103 = vsub.f32 %v1101, %v1102
    %v1104 = vand.u32 %v1103, 4294901760
    %1105 = vmatmul.f32.gmra.mxu0 %v1104
    %v1106 = vpop.f32.mrf.mxu0
    %v1107 = vadd.f32 0.0, %v1106
    %1108 = vdwg.mxu0
    %1109 = vmatpush.msra.mxu0 0.0
    %1110 = vmatpush.msra.mxu0 0.0
    %1111 = vmatpush.msra.mxu0 0.0
    %1112 = vmatpush.msra.mxu0 0.0
    %1113 = vmatpush.msra.mxu0 0.0
    %1114 = vmatpush.msra.mxu0 0.0
    %1115 = vmatpush.msra.mxu0 0.0
    %1116 = vmatpush.msra.mxu0 0.0
    %1117 = vmatpush.msra.mxu0 0.0
    %1118 = vmatpush.msra.mxu0 0.0
    %1119 = vmatpush.msra.mxu0 0.0
    %1120 = vmatpush.msra.mxu0 0.0
    %1121 = vmatpush.msra.mxu0 0.0
    %1122 = vmatpush.msra.mxu0 0.0
    %1123 = vmatpush.msra.mxu0 0.0
    %v1124 = vand.u32 %v1082, 4294901760
    %v1125 = vsub.f32 %v1082, %v1124
    %v1126 = vand.u32 %v1125, 4294901760
    %v1127 = vsub.f32 %v1125, %v1126
    %v1128 = vand.u32 %v1127, 4294901760
    %1129 = vmatpush.msra.mxu0 %v1128
    %v1130 = vand.u32 %v62, 4294901760
    %1131 = vmatmul.f32.gmra.mxu0 %v1130
    %v1132 = vpop.f32.mrf.mxu0
    %v1133 = vadd.f32 %v1107, %v1132
    %1134 = vdwg.mxu0
    %1135 = vmatpush.msra.mxu0 0.0
    %1136 = vmatpush.msra.mxu0 0.0
    %1137 = vmatpush.msra.mxu0 0.0
    %1138 = vmatpush.msra.mxu0 0.0
    %1139 = vmatpush.msra.mxu0 0.0
    %1140 = vmatpush.msra.mxu0 0.0
    %1141 = vmatpush.msra.mxu0 0.0
    %1142 = vmatpush.msra.mxu0 0.0
    %1143 = vmatpush.msra.mxu0 0.0
    %1144 = vmatpush.msra.mxu0 0.0
    %1145 = vmatpush.msra.mxu0 0.0
    %1146 = vmatpush.msra.mxu0 0.0
    %1147 = vmatpush.msra.mxu0 0.0
    %1148 = vmatpush.msra.mxu0 0.0
    %1149 = vmatpush.msra.mxu0 0.0
    %v1150 = vand.u32 %v1082, 4294901760
    %v1151 = vsub.f32 %v1082, %v1150
    %1152 = vmatpush.msra.mxu0 %v1151
    %v1153 = vand.u32 %v62, 4294901760
    %v1154 = vsub.f32 %v62, %v1153
    %1155 = vmatmul.f32.gmra.mxu0 %v1154
    %v1156 = vpop.f32.mrf.mxu0
    %v1157 = vadd.f32 %v1133, %v1156
    %1158 = vdwg.mxu0
    %1159 = vmatpush.msra.mxu0 0.0
    %1160 = vmatpush.msra.mxu0 0.0
    %1161 = vmatpush.msra.mxu0 0.0
    %1162 = vmatpush.msra.mxu0 0.0
    %1163 = vmatpush.msra.mxu0 0.0
    %1164 = vmatpush.msra.mxu0 0.0
    %1165 = vmatpush.msra.mxu0 0.0
    %1166 = vmatpush.msra.mxu0 0.0
    %1167 = vmatpush.msra.mxu0 0.0
    %1168 = vmatpush.msra.mxu0 0.0
    %1169 = vmatpush.msra.mxu0 0.0
    %1170 = vmatpush.msra.mxu0 0.0
    %1171 = vmatpush.msra.mxu0 0.0
    %1172 = vmatpush.msra.mxu0 0.0
    %1173 = vmatpush.msra.mxu0 0.0
    %v1174 = vand.u32 %v1082, 4294901760
    %1175 = vmatpush.msra.mxu0 %v1174
    %v1176 = vand.u32 %v62, 4294901760
    %v1177 = vsub.f32 %v62, %v1176
    %v1178 = vand.u32 %v1177, 4294901760
    %1179 = vmatmul.f32.gmra.mxu0 %v1178
    %v1180 = vpop.f32.mrf.mxu0
    %v1181 = vadd.f32 %v1157, %v1180
    %1182 = vdwg.mxu0
    %1183 = vmatpush.msra.mxu0 0.0
    %1184 = vmatpush.msra.mxu0 0.0
    %1185 = vmatpush.msra.mxu0 0.0
    %1186 = vmatpush.msra.mxu0 0.0
    %1187 = vmatpush.msra.mxu0 0.0
    %1188 = vmatpush.msra.mxu0 0.0
    %1189 = vmatpush.msra.mxu0 0.0
    %1190 = vmatpush.msra.mxu0 0.0
    %1191 = vmatpush.msra.mxu0 0.0
    %1192 = vmatpush.msra.mxu0 0.0
    %1193 = vmatpush.msra.mxu0 0.0
    %1194 = vmatpush.msra.mxu0 0.0
    %1195 = vmatpush.msra.mxu0 0.0
    %1196 = vmatpush.msra.mxu0 0.0
    %1197 = vmatpush.msra.mxu0 0.0
    %v1198 = vand.u32 %v1082, 4294901760
    %v1199 = vsub.f32 %v1082, %v1198
    %v1200 = vand.u32 %v1199, 4294901760
    %1201 = vmatpush.msra.mxu0 %v1200
    %v1202 = vand.u32 %v62, 4294901760
    %1203 = vmatmul.f32.gmra.mxu0 %v1202
    %v1204 = vpop.f32.mrf.mxu0
    %v1205 = vadd.f32 %v1181, %v1204
    %1206 = vdwg.mxu0
    %1207 = vmatpush.msra.mxu0 0.0
    %1208 = vmatpush.msra.mxu0 0.0
    %1209 = vmatpush.msra.mxu0 0.0
    %1210 = vmatpush.msra.mxu0 0.0
    %1211 = vmatpush.msra.mxu0 0.0
    %1212 = vmatpush.msra.mxu0 0.0
    %1213 = vmatpush.msra.mxu0 0.0
    %1214 = vmatpush.msra.mxu0 0.0
    %1215 = vmatpush.msra.mxu0 0.0
    %1216 = vmatpush.msra.mxu0 0.0
    %1217 = vmatpush.msra.mxu0 0.0
    %1218 = vmatpush.msra.mxu0 0.0
    %1219 = vmatpush.msra.mxu0 0.0
    %1220 = vmatpush.msra.mxu0 0.0
    %1221 = vmatpush.msra.mxu0 0.0
    %v1222 = vand.u32 %v1082, 4294901760
    %1223 = vmatpush.msra.mxu0 %v1222
    %v1224 = vand.u32 %v62, 4294901760
    %1225 = vmatmul.f32.gmra.mxu0 %v1224
    %v1226 = vpop.f32.mrf.mxu0
    %v1227 = vadd.f32 %v1205, %v1226
    %1228 = vdwg.mxu0
    %v1229 = vadd.f32 %v1071, %v1079
    %v1230 = vadd.f32 %v1229, %v214
    %v1231 = vlog2.pop %v1227
    %v1232 = vmul.f32 %v1231, 0.6931472
    %v1233 = vadd.f32 %v1230, %v1232
    %vm1234 = vcmp.gt.f32.partialorder %v1073, 0.0
    %v1235 = vsel %vm1234, 1, 0
    %v1236 = vperm.slane %v1235, 0
    %vm1237 = vcmp.eq.s32.totalorder %v1236, 1
    %v1238 = vsel %vm1237, %v1233, %v1069
    %s1239 = scalar_lea.vmem [#allocation3], 56
    %v1240 = vld [vmem:[%s1239] sm:$0xff]
    %s1241 = scalar_lea.vmem %s1, 7
    %v1242 = vld [vmem:[%s1241] sm:$0x1]
    %v1243 = vrot.slane %v1238, 4
    %v1244 = vmax.f32 %v1238, %v1243
    %v1245 = vrot.slane %v1244, 2
    %v1246 = vmax.f32 %v1244, %v1245
    %v1247 = vrot.slane %v1246, 1
    %v1248 = vmax.f32 %v1246, %v1247
    %v1249 = vsub.f32 %v1238, %v1248
    %v1250 = vmul.f32 %v1249, 1.442695
    %v1251 = vpow.pop %v1250
    %1252 = vmatpush.msra.mxu0 0.0
    %1253 = vmatpush.msra.mxu0 0.0
    %1254 = vmatpush.msra.mxu0 0.0
    %1255 = vmatpush.msra.mxu0 0.0
    %1256 = vmatpush.msra.mxu0 0.0
    %1257 = vmatpush.msra.mxu0 0.0
    %1258 = vmatpush.msra.mxu0 0.0
    %1259 = vmatpush.msra.mxu0 0.0
    %1260 = vmatpush.msra.mxu0 0.0
    %1261 = vmatpush.msra.mxu0 0.0
    %1262 = vmatpush.msra.mxu0 0.0
    %1263 = vmatpush.msra.mxu0 0.0
    %1264 = vmatpush.msra.mxu0 0.0
    %1265 = vmatpush.msra.mxu0 0.0
    %1266 = vmatpush.msra.mxu0 0.0
    %v1267 = vand.u32 %v1251, 4294901760
    %1268 = vmatpush.msra.mxu0 %v1267
    %v1269 = vand.u32 %v62, 4294901760
    %v1270 = vsub.f32 %v62, %v1269
    %v1271 = vand.u32 %v1270, 4294901760
    %v1272 = vsub.f32 %v1270, %v1271
    %v1273 = vand.u32 %v1272, 4294901760
    %1274 = vmatmul.f32.gmra.mxu0 %v1273
    %v1275 = vpop.f32.mrf.mxu0
    %v1276 = vadd.f32 0.0, %v1275
    %1277 = vdwg.mxu0
    %1278 = vmatpush.msra.mxu0 0.0
    %1279 = vmatpush.msra.mxu0 0.0
    %1280 = vmatpush.msra.mxu0 0.0
    %1281 = vmatpush.msra.mxu0 0.0
    %1282 = vmatpush.msra.mxu0 0.0
    %1283 = vmatpush.msra.mxu0 0.0
    %1284 = vmatpush.msra.mxu0 0.0
    %1285 = vmatpush.msra.mxu0 0.0
    %1286 = vmatpush.msra.mxu0 0.0
    %1287 = vmatpush.msra.mxu0 0.0
    %1288 = vmatpush.msra.mxu0 0.0
    %1289 = vmatpush.msra.mxu0 0.0
    %1290 = vmatpush.msra.mxu0 0.0
    %1291 = vmatpush.msra.mxu0 0.0
    %1292 = vmatpush.msra.mxu0 0.0
    %v1293 = vand.u32 %v1251, 4294901760
    %v1294 = vsub.f32 %v1251, %v1293
    %v1295 = vand.u32 %v1294, 4294901760
    %v1296 = vsub.f32 %v1294, %v1295
    %v1297 = vand.u32 %v1296, 4294901760
    %1298 = vmatpush.msra.mxu0 %v1297
    %v1299 = vand.u32 %v62, 4294901760
    %1300 = vmatmul.f32.gmra.mxu0 %v1299
    %v1301 = vpop.f32.mrf.mxu0
    %v1302 = vadd.f32 %v1276, %v1301
    %1303 = vdwg.mxu0
    %1304 = vmatpush.msra.mxu0 0.0
    %1305 = vmatpush.msra.mxu0 0.0
    %1306 = vmatpush.msra.mxu0 0.0
    %1307 = vmatpush.msra.mxu0 0.0
    %1308 = vmatpush.msra.mxu0 0.0
    %1309 = vmatpush.msra.mxu0 0.0
    %1310 = vmatpush.msra.mxu0 0.0
    %1311 = vmatpush.msra.mxu0 0.0
    %1312 = vmatpush.msra.mxu0 0.0
    %1313 = vmatpush.msra.mxu0 0.0
    %1314 = vmatpush.msra.mxu0 0.0
    %1315 = vmatpush.msra.mxu0 0.0
    %1316 = vmatpush.msra.mxu0 0.0
    %1317 = vmatpush.msra.mxu0 0.0
    %1318 = vmatpush.msra.mxu0 0.0
    %v1319 = vand.u32 %v1251, 4294901760
    %v1320 = vsub.f32 %v1251, %v1319
    %1321 = vmatpush.msra.mxu0 %v1320
    %v1322 = vand.u32 %v62, 4294901760
    %v1323 = vsub.f32 %v62, %v1322
    %1324 = vmatmul.f32.gmra.mxu0 %v1323
    %v1325 = vpop.f32.mrf.mxu0
    %v1326 = vadd.f32 %v1302, %v1325
    %1327 = vdwg.mxu0
    %1328 = vmatpush.msra.mxu0 0.0
    %1329 = vmatpush.msra.mxu0 0.0
    %1330 = vmatpush.msra.mxu0 0.0
    %1331 = vmatpush.msra.mxu0 0.0
    %1332 = vmatpush.msra.mxu0 0.0
    %1333 = vmatpush.msra.mxu0 0.0
    %1334 = vmatpush.msra.mxu0 0.0
    %1335 = vmatpush.msra.mxu0 0.0
    %1336 = vmatpush.msra.mxu0 0.0
    %1337 = vmatpush.msra.mxu0 0.0
    %1338 = vmatpush.msra.mxu0 0.0
    %1339 = vmatpush.msra.mxu0 0.0
    %1340 = vmatpush.msra.mxu0 0.0
    %1341 = vmatpush.msra.mxu0 0.0
    %1342 = vmatpush.msra.mxu0 0.0
    %v1343 = vand.u32 %v1251, 4294901760
    %1344 = vmatpush.msra.mxu0 %v1343
    %v1345 = vand.u32 %v62, 4294901760
    %v1346 = vsub.f32 %v62, %v1345
    %v1347 = vand.u32 %v1346, 4294901760
    %1348 = vmatmul.f32.gmra.mxu0 %v1347
    %v1349 = vpop.f32.mrf.mxu0
    %v1350 = vadd.f32 %v1326, %v1349
    %1351 = vdwg.mxu0
    %1352 = vmatpush.msra.mxu0 0.0
    %1353 = vmatpush.msra.mxu0 0.0
    %1354 = vmatpush.msra.mxu0 0.0
    %1355 = vmatpush.msra.mxu0 0.0
    %1356 = vmatpush.msra.mxu0 0.0
    %1357 = vmatpush.msra.mxu0 0.0
    %1358 = vmatpush.msra.mxu0 0.0
    %1359 = vmatpush.msra.mxu0 0.0
    %1360 = vmatpush.msra.mxu0 0.0
    %1361 = vmatpush.msra.mxu0 0.0
    %1362 = vmatpush.msra.mxu0 0.0
    %1363 = vmatpush.msra.mxu0 0.0
    %1364 = vmatpush.msra.mxu0 0.0
    %1365 = vmatpush.msra.mxu0 0.0
    %1366 = vmatpush.msra.mxu0 0.0
    %v1367 = vand.u32 %v1251, 4294901760
    %v1368 = vsub.f32 %v1251, %v1367
    %v1369 = vand.u32 %v1368, 4294901760
    %1370 = vmatpush.msra.mxu0 %v1369
    %v1371 = vand.u32 %v62, 4294901760
    %1372 = vmatmul.f32.gmra.mxu0 %v1371
    %v1373 = vpop.f32.mrf.mxu0
    %v1374 = vadd.f32 %v1350, %v1373
    %1375 = vdwg.mxu0
    %1376 = vmatpush.msra.mxu0 0.0
    %1377 = vmatpush.msra.mxu0 0.0
    %1378 = vmatpush.msra.mxu0 0.0
    %1379 = vmatpush.msra.mxu0 0.0
    %1380 = vmatpush.msra.mxu0 0.0
    %1381 = vmatpush.msra.mxu0 0.0
    %1382 = vmatpush.msra.mxu0 0.0
    %1383 = vmatpush.msra.mxu0 0.0
    %1384 = vmatpush.msra.mxu0 0.0
    %1385 = vmatpush.msra.mxu0 0.0
    %1386 = vmatpush.msra.mxu0 0.0
    %1387 = vmatpush.msra.mxu0 0.0
    %1388 = vmatpush.msra.mxu0 0.0
    %1389 = vmatpush.msra.mxu0 0.0
    %1390 = vmatpush.msra.mxu0 0.0
    %v1391 = vand.u32 %v1251, 4294901760
    %1392 = vmatpush.msra.mxu0 %v1391
    %v1393 = vand.u32 %v62, 4294901760
    %1394 = vmatmul.f32.gmra.mxu0 %v1393
    %v1395 = vpop.f32.mrf.mxu0
    %v1396 = vadd.f32 %v1374, %v1395
    %1397 = vdwg.mxu0
    %v1398 = vadd.f32 %v1240, %v1248
    %v1399 = vadd.f32 %v1398, %v214
    %v1400 = vlog2.pop %v1396
    %v1401 = vmul.f32 %v1400, 0.6931472
    %v1402 = vadd.f32 %v1399, %v1401
    %vm1403 = vcmp.gt.f32.partialorder %v1242, 0.0
    %v1404 = vsel %vm1403, 1, 0
    %v1405 = vperm.slane %v1404, 0
    %vm1406 = vcmp.eq.s32.totalorder %v1405, 1
    %v1407 = vsel %vm1406, %v1402, %v1238
    %1408 = vst [vmem:[#allocation2] sm:$0xff] %v1407
    // Predicated region
    $region30: #{tpu_custom_call.1} parent=1 // pred_check
      %p1409 = pneg %p37
    $region31: #{tpu_custom_call.1} parent=1 // pred_check_branch
      %1411 = sbr.rel (%p1409) target = $region33
    $region32: #{tpu_custom_call.1} parent=1 // pred_region
      %v1412 = vld [vmem:[%s4] sm:$0xff]
      %1414 = vset.pattern.permute.xlu0 0
      %1415 = vperm.xlu0 %1414, %v1412
      %v1416 = vpop.permute.xlu0 %1415
      %v1418 = vadd.f32 %v1407, %v1416
      %v1419 = vrot.slane %v1418, 4
      %v1420 = vmax.f32 %v1418, %v1419
      %v1421 = vrot.slane %v1420, 2
      %v1422 = vmax.f32 %v1420, %v1421
      %v1423 = vrot.slane %v1422, 1
      %v1424 = vmax.f32 %v1422, %v1423
      %v1425 = vsub.f32 %v1418, %v1424
      %v1426 = vmul.f32 %v1425, 1.442695
      %v1427 = vpow.pop %v1426
      %v1428 = vrot.slane %v1427, 4
      %v1429 = vadd.f32 %v1427, %v1428
      %v1430 = vrot.slane %v1429, 2
      %v1431 = vadd.f32 %v1429, %v1430
      %v1432 = vrot.slane %v1431, 1
      %v1433 = vadd.f32 %v1431, %v1432
      %v1434 = vlog2.pop %v1433
      %v1435 = vmul.f32 %v1434, 0.6931472
      %v1436 = vadd.f32 %v1424, %v1435
      %1437 = vst [vmem:[#allocation6] sm:$0x1] %v1436
    $region33: #{tpu_custom_call.1} parent=1 // pred_fallthru
      _
    // Predicated region
    $region34: #{tpu_custom_call.1} parent=1 // pred_check
      _
    $region35: #{tpu_custom_call.1} parent=1 // pred_check_branch
      %1439 = sbr.rel (0) target = $region37
    $region36: #{tpu_custom_call.1} parent=1 // pred_region
      %1441 = vsyncadd [#allocation5], 0
      %s1443 = sshll.u32 [#allocation6], 4
      %s1444 = int_to_ptr.vmem [resolvable:$true] %s1443
      %s1445 = sshll.u32 %s5, 4
      %s1446 = int_to_ptr.hbm [resolvable:$true] %s1445
      %1448 = dma.vmem_to_hbm [thread:$0]  %s1444, 16, %s1446, [#allocation5]
    $region37: #{tpu_custom_call.1} parent=1 // pred_fallthru
      _
    // Predicated region
    $region38: #{tpu_custom_call.1} parent=1 // pred_check
      _
    $region39: #{tpu_custom_call.1} parent=1 // pred_check_branch
      %1450 = sbr.rel (0) target = $region41
    $region40: #{tpu_custom_call.1} parent=1 // pred_region
      %1452 = dma.done [#allocation5], 16
    $region41: #{tpu_custom_call.1} parent=1 // pred_fallthru
      _
    %1453 = vsyncpa [#allocation4], 1
    %1454 = vsyncpa [#allocation5], 1

</llo_original>
